<compile_context>
chip_gen: v5e
topology: v5e:2x2
jax: 0.10.0
libtpu: 0.0.40
codegen_flags: <defaults>
</compile_context>

<pallas_src>
import math

import jax
import jax.numpy as jnp
from jax import lax
from jax.experimental import pallas as pl
from jax.experimental.pallas import tpu as pltpu


OUT_PAD = 128  # lane-padded output width (true output width is 6)


# ----------------------------- Pallas kernel --------------------------------


def _bitransloc_kernel(
    feat_ref,        # (TB, Dp)       bf16  mean-pooled patch vector per image
    we_ref,          # (Dp, H)        bf16  patch embedding weight
    be_ref,          # (1, H)         f32   patch embedding bias
    w1_ref,          # (H, 2*ch)      bf16  fused head layer-1 weight [t | r]
    b1_ref,          # (1, 2*ch)      f32   fused head layer-1 bias   [t | r]
    w2_ref,          # (2*ch, 128)    bf16  block-diagonal, lane-padded layer-2
    b2_ref,          # (1, 128)       f32   lane-padded layer-2 bias
    out_ref,         # (TB, 128)      f32   columns 0..5 are the real output
):
    # Patch embedding of the mean-pooled patch vector -> (TB, H), f32 acc.
    emb = (
        jnp.dot(feat_ref[...], we_ref[...], preferred_element_type=jnp.float32)
        + be_ref[...]
    )

    # Fused regressor heads, layer 1: (TB, H) @ (H, 2*ch) -> (TB, 2*ch).
    h = (
        jnp.dot(
            emb.astype(jnp.bfloat16), w1_ref[...],
            preferred_element_type=jnp.float32,
        )
        + b1_ref[...]
    )

    # Exact erf-GELU (matches torch.nn.functional.gelu default), f32 math.
    inv_sqrt2 = jnp.float32(0.7071067811865476)
    h = 0.5 * h * (1.0 + lax.erf(h * inv_sqrt2))

    # Fused layer 2 via block-diagonal lane-padded W2 -> (TB, 128).
    out = (
        jnp.dot(
            h.astype(jnp.bfloat16), w2_ref[...],
            preferred_element_type=jnp.float32,
        )
        + b2_ref[...]
    )
    out_ref[...] = out.astype(out_ref.dtype)


# ------------------------------ wrapper --------------------------------------


def _round_up(a, b):
    return ((a + b - 1) // b) * b


def fuse_params(params, *, out_pad=OUT_PAD):
    """Pre-fuse the two regressor heads into one wide layer-1 and one
    block-diagonal, lane-padded layer-2.  Pure layout glue, exact."""
    we, be, w1t, b1t, w2t, b2t, w1r, b1r, w2r, b2r = params
    ch = w1t.shape[1]
    dt, dr = w2t.shape[1], w2r.shape[1]

    w1 = jnp.concatenate([w1t, w1r], axis=1)           # (H, 2*ch)
    b1 = jnp.concatenate([b1t, b1r], axis=1)           # (1, 2*ch)

    w2 = jnp.zeros((2 * ch, out_pad), jnp.float32)
    w2 = w2.at[:ch, 0:dt].set(w2t).at[ch:, dt:dt + dr].set(w2r)
    b2 = jnp.zeros((1, out_pad), jnp.float32)
    b2 = b2.at[:, 0:dt].set(b2t).at[:, dt:dt + dr].set(b2r)

    return (
        we.astype(jnp.bfloat16),
        be.astype(jnp.float32),
        w1.astype(jnp.bfloat16),
        b1.astype(jnp.float32),
        w2.astype(jnp.bfloat16),
        b2.astype(jnp.float32),
        dt + dr,
    )


def bitransloc_forward(x, params, *, patch_size):
    """x: (B, C, H, W) NCHW image batch (float32). Returns (B, 6) float32."""
    B, C, H, W = x.shape
    p = patch_size
    assert H % p == 0 and W % p == 0
    nh, nw = H // p, W // p
    n_tokens = nh * nw

    # Layout glue: extract non-overlapping patches, flatten as (C, p, p), then
    # mean-pool over tokens HERE (exact: mean commutes with the linear embed).
    patches = x.reshape(B, C, nh, p, nw, p)
    patches = jnp.transpose(patches, (0, 2, 4, 1, 3, 5))       # (B, nh, nw, C, p, p)
    patches = patches.reshape(B, n_tokens, C * p * p)           # (B, N, Dp)
    mean_patch = jnp.mean(patches, axis=1)                      # (B, Dp), f32

    we, be, w1, b1, w2, b2, out_dim = fuse_params(params)
    Dp, Hd = we.shape
    ch2 = w1.shape[1]

    # Batch tiling: pad B up to a multiple of TB (TB a multiple of 8).
    TB = min(128, _round_up(B, 8))
    B_pad = _round_up(B, TB)
    feat = mean_patch.astype(jnp.bfloat16)
    if B_pad != B:
        feat = jnp.pad(feat, ((0, B_pad - B), (0, 0)))

    const = lambda i: (0, 0)
    out_padded = pl.pallas_call(
        _bitransloc_kernel,
        out_shape=jax.ShapeDtypeStruct((B_pad, OUT_PAD), jnp.float32),
        grid_spec=pltpu.PrefetchScalarGridSpec(
            num_scalar_prefetch=0,
            grid=(B_pad // TB,),
            in_specs=[
                pl.BlockSpec((TB, Dp), lambda i: (i, 0)),   # mean patches
                pl.BlockSpec((Dp, Hd), const),              # We
                pl.BlockSpec((1, Hd), const),               # be
                pl.BlockSpec((Hd, ch2), const),             # W1 (fused heads)
                pl.BlockSpec((1, ch2), const),              # b1
                pl.BlockSpec((ch2, OUT_PAD), const),        # W2 (block-diag)
                pl.BlockSpec((1, OUT_PAD), const),          # b2
            ],
            out_specs=pl.BlockSpec((TB, OUT_PAD), lambda i: (i, 0)),
        ),
        compiler_params=pltpu.CompilerParams(
            dimension_semantics=("parallel",),
            vmem_limit_bytes=32 << 20,
        ),
    )(feat, we, be, w1, b1, w2, b2)

    # Strip batch padding and lane padding -> (B, 6) == cat([x_t, x_rot], 1).
    return out_padded[:B, :out_dim]


# --------------------------- parameter init ----------------------------------


def _xavier_uniform(key, fan_in, fan_out):
    bound = math.sqrt(6.0 / (fan_in + fan_out))
    return jax.random.uniform(
        key, (fan_in, fan_out), jnp.float32, minval=-bound, maxval=bound
    )


def _linear_bias(key, fan_in, fan_out):
    # PyTorch nn.Linear default bias init: U(-1/sqrt(fan_in), 1/sqrt(fan_in)).
    bound = 1.0 / math.sqrt(fan_in)
    return jax.random.uniform(
        key, (1, fan_out), jnp.float32, minval=-bound, maxval=bound
    )


def init_params(key, *, patch_dim, hidden_dim, ch=1024, out_dim=3):
    keys = jax.random.split(key, 10)
    we = _xavier_uniform(keys[0], patch_dim, hidden_dim)
    be = _linear_bias(keys[1], patch_dim, hidden_dim)

    w1t = _xavier_uniform(keys[2], hidden_dim, ch)
    b1t = _linear_bias(keys[3], hidden_dim, ch)
    w2t = _xavier_uniform(keys[4], ch, out_dim)
    b2t = _linear_bias(keys[5], ch, out_dim)

    w1r = _xavier_uniform(keys[6], hidden_dim, ch)
    b1r = _linear_bias(keys[7], hidden_dim, ch)
    w2r = _xavier_uniform(keys[8], ch, out_dim)
    b2r = _linear_bias(keys[9], ch, out_dim)

    return (we, be, w1t, b1t, w2t, b2t, w1r, b1r, w2r, b2r)


# -------------------------------- main ----------------------------------------


if __name__ == "__main__":
    # Small, module-consistent shapes.
    B, C, H, W = 2, 4, 16, 16
    patch_size = 4
    hidden_dim = 64
    patch_dim = C * patch_size * patch_size  # 64

    key = jax.random.PRNGKey(0)
    k_x, k_p = jax.random.split(key)
    x = jax.random.normal(k_x, (B, C, H, W), jnp.float32)
    params = init_params(k_p, patch_dim=patch_dim, hidden_dim=hidden_dim)

    out = bitransloc_forward(x, params, patch_size=patch_size)
    out = jax.block_until_ready(out)

    assert out.shape == (B, 6), out.shape
    assert out.dtype == jnp.float32
    assert bool(jnp.all(jnp.isfinite(out)))
    print("KERNEL_OK")
</pallas_src>

<mosaic_0001>
module attributes {stable_mosaic.version = 11 : i64} {
  func.func @_bitransloc_kernel(%arg0: i32, %arg1: memref<8x64xbf16, #tpu.memory_space<vmem>>, %arg2: memref<64x64xbf16, #tpu.memory_space<vmem>>, %arg3: memref<1x64xf32, #tpu.memory_space<vmem>>, %arg4: memref<64x2048xbf16, #tpu.memory_space<vmem>>, %arg5: memref<1x2048xf32, #tpu.memory_space<vmem>>, %arg6: memref<2048x128xbf16, #tpu.memory_space<vmem>>, %arg7: memref<1x128xf32, #tpu.memory_space<vmem>>, %arg8: memref<8x128xf32, #tpu.memory_space<vmem>>) attributes {dimension_semantics = [#tpu.dimension_semantics<parallel>], iteration_bounds = array<i64: 1>, scalar_prefetch = 0 : i64, scratch_operands = 0 : i64, tpu.core_type = #tpu.core_type<tc>, window_params = [{transform_indices = @transform_0, window_bounds = array<i64: 8, 64>}, {pipeline_mode = #tpu.pipeline_mode<synchronous>, transform_indices = @transform_1, window_bounds = array<i64: 64, 64>}, {pipeline_mode = #tpu.pipeline_mode<synchronous>, transform_indices = @transform_2, window_bounds = array<i64: 1, 64>}, {pipeline_mode = #tpu.pipeline_mode<synchronous>, transform_indices = @transform_3, window_bounds = array<i64: 64, 2048>}, {pipeline_mode = #tpu.pipeline_mode<synchronous>, transform_indices = @transform_4, window_bounds = array<i64: 1, 2048>}, {pipeline_mode = #tpu.pipeline_mode<synchronous>, transform_indices = @transform_5, window_bounds = array<i64: 2048, 128>}, {pipeline_mode = #tpu.pipeline_mode<synchronous>, transform_indices = @transform_6, window_bounds = array<i64: 1, 128>}, {transform_indices = @transform_7, window_bounds = array<i64: 8, 128>}]} {
    %c0 = arith.constant 0 : index
    %c0_0 = arith.constant 0 : index
    %0 = vector.load %arg1[%c0, %c0_0] : memref<8x64xbf16, #tpu.memory_space<vmem>>, vector<8x64xbf16>
    %c0_1 = arith.constant 0 : index
    %c0_2 = arith.constant 0 : index
    %1 = vector.load %arg2[%c0_1, %c0_2] : memref<64x64xbf16, #tpu.memory_space<vmem>>, vector<64x64xbf16>
    %cst = arith.constant dense<0.000000e+00> : vector<8x64xf32>
    %2 = tpu.matmul %0, %1, %cst {dimension_numbers = #tpu.dot_dimension_numbers<[1], [0], [0], [1], [0, 0, 1, 1], [], []>} : vector<8x64xbf16>, vector<64x64xbf16>, vector<8x64xf32> -> vector<8x64xf32>
    %c0_3 = arith.constant 0 : index
    %c0_4 = arith.constant 0 : index
    %3 = vector.load %arg3[%c0_3, %c0_4] : memref<1x64xf32, #tpu.memory_space<vmem>>, vector<1x64xf32>
    %4 = vector.broadcast %3 : vector<1x64xf32> to vector<8x64xf32>
    %5 = arith.addf %2, %4 : vector<8x64xf32>
    %6 = arith.truncf %5 : vector<8x64xf32> to vector<8x64xbf16>
    %c0_5 = arith.constant 0 : index
    %c0_6 = arith.constant 0 : index
    %7 = vector.load %arg4[%c0_5, %c0_6] : memref<64x2048xbf16, #tpu.memory_space<vmem>>, vector<64x2048xbf16>
    %cst_7 = arith.constant dense<0.000000e+00> : vector<8x2048xf32>
    %8 = tpu.matmul %6, %7, %cst_7 {dimension_numbers = #tpu.dot_dimension_numbers<[1], [0], [0], [1], [0, 0, 1, 1], [], []>} : vector<8x64xbf16>, vector<64x2048xbf16>, vector<8x2048xf32> -> vector<8x2048xf32>
    %c0_8 = arith.constant 0 : index
    %c0_9 = arith.constant 0 : index
    %9 = vector.load %arg5[%c0_8, %c0_9] : memref<1x2048xf32, #tpu.memory_space<vmem>>, vector<1x2048xf32>
    %10 = vector.broadcast %9 : vector<1x2048xf32> to vector<8x2048xf32>
    %11 = arith.addf %8, %10 : vector<8x2048xf32>
    %cst_10 = arith.constant 5.000000e-01 : f32
    %12 = vector.broadcast %cst_10 : f32 to vector<8x2048xf32>
    %13 = arith.mulf %12, %11 : vector<8x2048xf32>
    %cst_11 = arith.constant 0.707106769 : f32
    %14 = vector.broadcast %cst_11 : f32 to vector<8x2048xf32>
    %15 = arith.mulf %11, %14 : vector<8x2048xf32>
    %16 = math.erf %15 : vector<8x2048xf32>
    %cst_12 = arith.constant 1.000000e+00 : f32
    %17 = vector.broadcast %cst_12 : f32 to vector<8x2048xf32>
    %18 = arith.addf %17, %16 : vector<8x2048xf32>
    %19 = arith.mulf %13, %18 : vector<8x2048xf32>
    %20 = arith.truncf %19 : vector<8x2048xf32> to vector<8x2048xbf16>
    %c0_13 = arith.constant 0 : index
    %c0_14 = arith.constant 0 : index
    %21 = vector.load %arg6[%c0_13, %c0_14] : memref<2048x128xbf16, #tpu.memory_space<vmem>>, vector<2048x128xbf16>
    %cst_15 = arith.constant dense<0.000000e+00> : vector<8x128xf32>
    %22 = tpu.matmul %20, %21, %cst_15 {dimension_numbers = #tpu.dot_dimension_numbers<[1], [0], [0], [1], [0, 0, 1, 1], [], []>} : vector<8x2048xbf16>, vector<2048x128xbf16>, vector<8x128xf32> -> vector<8x128xf32>
    %c0_16 = arith.constant 0 : index
    %c0_17 = arith.constant 0 : index
    %23 = vector.load %arg7[%c0_16, %c0_17] : memref<1x128xf32, #tpu.memory_space<vmem>>, vector<1x128xf32>
    %24 = vector.broadcast %23 : vector<1x128xf32> to vector<8x128xf32>
    %25 = arith.addf %22, %24 : vector<8x128xf32>
    %c0_18 = arith.constant 0 : index
    %c0_19 = arith.constant 0 : index
    %26 = vector.load %arg8[%c0_18, %c0_19] : memref<8x128xf32, #tpu.memory_space<vmem>>, vector<8x128xf32>
    tpu.vector_store %arg8[%c0_18, %c0_19], %25 {strides = array<i32>} : memref<8x128xf32, #tpu.memory_space<vmem>>, vector<8x128xf32>,
    return
  }
  func.func @transform_0(%arg0: i32) -> (i32, i32) {
    %c0_i32 = arith.constant 0 : i32
    %c0_i32_0 = arith.constant 0 : i32
    return %arg0, %c0_i32 : i32, i32
  }
  func.func @transform_1(%arg0: i32) -> (i32, i32) {
    %c0_i32 = arith.constant 0 : i32
    %c0_i32_0 = arith.constant 0 : i32
    %c0_i32_1 = arith.constant 0 : i32
    return %c0_i32, %c0_i32_0 : i32, i32
  }
  func.func @transform_2(%arg0: i32) -> (i32, i32) {
    %c0_i32 = arith.constant 0 : i32
    %c0_i32_0 = arith.constant 0 : i32
    %c0_i32_1 = arith.constant 0 : i32
    return %c0_i32, %c0_i32_0 : i32, i32
  }
  func.func @transform_3(%arg0: i32) -> (i32, i32) {
    %c0_i32 = arith.constant 0 : i32
    %c0_i32_0 = arith.constant 0 : i32
    %c0_i32_1 = arith.constant 0 : i32
    return %c0_i32, %c0_i32_0 : i32, i32
  }
  func.func @transform_4(%arg0: i32) -> (i32, i32) {
    %c0_i32 = arith.constant 0 : i32
    %c0_i32_0 = arith.constant 0 : i32
    %c0_i32_1 = arith.constant 0 : i32
    return %c0_i32, %c0_i32_0 : i32, i32
  }
  func.func @transform_5(%arg0: i32) -> (i32, i32) {
    %c0_i32 = arith.constant 0 : i32
    %c0_i32_0 = arith.constant 0 : i32
    %c0_i32_1 = arith.constant 0 : i32
    return %c0_i32, %c0_i32_0 : i32, i32
  }
  func.func @transform_6(%arg0: i32) -> (i32, i32) {
    %c0_i32 = arith.constant 0 : i32
    %c0_i32_0 = arith.constant 0 : i32
    %c0_i32_1 = arith.constant 0 : i32
    return %c0_i32, %c0_i32_0 : i32, i32
  }
  func.func @transform_7(%arg0: i32) -> (i32, i32) {
    %c0_i32 = arith.constant 0 : i32
    %c0_i32_0 = arith.constant 0 : i32
    return %arg0, %c0_i32 : i32, i32
  }
}

</mosaic_0001>

<llo_original>
// kernel: tpu_custom_call.1
$region0: #{tpu_custom_call.1}
  #allocation0 [shape = 'u32[]', space=smem, size = 0x4, offset = 0x4, fixed_abs, tag = 'smem constant byte address 0x4 - core index']
  #allocation1 [shape = 'u32[72,128]{1,0:T(1,128)}', space=vmem, size = 0x9000, scoped, tag = 'internal scratch']
  %s0 = inlined_call_operand.hbm [shape: bf16[8,64], index: 0, kind: input, shape index: {}]
  %s1 = inlined_call_operand.hbm [shape: bf16[64,64], index: 1, kind: input, shape index: {}]
  %s2 = inlined_call_operand.vmem [shape: f32[1,64], index: 2, kind: input, shape index: {}]
  %s3 = inlined_call_operand.hbm [shape: bf16[64,2048], index: 3, kind: input, shape index: {}]
  %s4 = inlined_call_operand.hbm [shape: f32[1,2048], index: 4, kind: input, shape index: {}]
  %s5 = inlined_call_operand.hbm [shape: bf16[2048,128], index: 5, kind: input, shape index: {}]
  %s6 = inlined_call_operand.vmem [shape: f32[1,128], index: 6, kind: input, shape index: {}]
  %s7 = inlined_call_operand.hbm [shape: f32[8,128], index: 7, kind: output, shape index: {}]
  %s8 = sld [smem:[#allocation0]]
  $region58: #{tpu_custom_call.1} parent=0
    _
  %s10 = ssub.s32 1, %s8
  %s11 = scalar_select 0, %s10, %s8
  $region1: #{tpu_custom_call.1} parent=0
    #allocation2 [shape = 'u8[2048]{0}', space=vmem, size = 0x800, scoped, tag = 'input window, operand 0, single buffered']
    #allocation3 [shape = 's32[1]{0}', space=sflag, size = 0x4, scoped, tag = 'scoped memory for tpu_custom_call.1']
    #allocation4 [shape = 's32[1]{0}', space=sflag, size = 0x4, scoped, tag = 'scoped memory for tpu_custom_call.1']
    #allocation5 [shape = 'u8[16384]{0}', space=vmem, size = 0x4000, scoped, tag = 'input window, operand 1, single buffered']
    #allocation6 [shape = 's32[1]{0}', space=sflag, size = 0x4, scoped, tag = 'scoped memory for tpu_custom_call.1']
    #allocation7 [shape = 'u8[262144]{0}', space=vmem, size = 0x40000, scoped, tag = 'input window, operand 3, single buffered']
    #allocation8 [shape = 'u8[8192]{0}', space=vmem, size = 0x2000, scoped, tag = 'input window, operand 4, single buffered']
    #allocation9 [shape = 's32[1]{0}', space=sflag, size = 0x4, scoped, tag = 'scoped memory for tpu_custom_call.1']
    #allocation10 [shape = 'u8[524288]{0}', space=vmem, size = 0x80000, scoped, tag = 'input window, operand 5, single buffered']
    #allocation11 [shape = 'u8[4096]{0}', space=vmem, size = 0x1000, scoped, tag = 'output window, operand 0, single buffered']
    %12 = vsyncpa [#allocation3], 0
    %13 = vsyncpa [#allocation6], 0
    %14 = vsyncpa [#allocation9], 0
    %15 = vsyncpa [#allocation4], 0
    // Predicated region
    $region2: #{tpu_custom_call.1} parent=1 // pred_check
      _
    $region3: #{tpu_custom_call.1} parent=1 // pred_check_branch
      %17 = sbr.rel (0) target = $region5
    $region4: #{tpu_custom_call.1} parent=1 // pred_region
      %19 = vsyncadd [#allocation3], 0
      %s21 = sshll.u32 %s0, 4
      %s22 = int_to_ptr.hbm [resolvable:$true] %s21
      %s23 = sshll.u32 [#allocation2], 4
      %s24 = int_to_ptr.vmem [resolvable:$true] %s23
      %26 = dma.hbm_to_vmem [thread:$0]  %s22, 64, %s24, [#allocation3]
    $region5: #{tpu_custom_call.1} parent=1 // pred_fallthru
      _
    // Predicated region
    $region6: #{tpu_custom_call.1} parent=1 // pred_check
      _
    $region7: #{tpu_custom_call.1} parent=1 // pred_check_branch
      %28 = sbr.rel (0) target = $region9
    $region8: #{tpu_custom_call.1} parent=1 // pred_region
      %30 = vsyncadd [#allocation6], 0
      %s31 = sshll.u32 %s1, 4
      %s32 = int_to_ptr.hbm [resolvable:$true] %s31
      %s33 = sshll.u32 [#allocation5], 4
      %s34 = int_to_ptr.vmem [resolvable:$true] %s33
      %39 = dma.hbm_to_vmem [thread:$0]  %s32, 512, %s34, [#allocation6], 64, 64, 4
    $region9: #{tpu_custom_call.1} parent=1 // pred_fallthru
      _
    // Predicated region
    $region10: #{tpu_custom_call.1} parent=1 // pred_check
      _
    $region11: #{tpu_custom_call.1} parent=1 // pred_check_branch
      %41 = sbr.rel (0) target = $region13
    $region12: #{tpu_custom_call.1} parent=1 // pred_region
      _
    $region13: #{tpu_custom_call.1} parent=1 // pred_fallthru
      _
    // Predicated region
    $region14: #{tpu_custom_call.1} parent=1 // pred_check
      _
    $region15: #{tpu_custom_call.1} parent=1 // pred_check_branch
      %43 = sbr.rel (0) target = $region17
    $region16: #{tpu_custom_call.1} parent=1 // pred_region
      %45 = vsyncadd [#allocation6], 0
      %s46 = sshll.u32 %s3, 4
      %s47 = int_to_ptr.hbm [resolvable:$true] %s46
      %s48 = sshll.u32 [#allocation7], 4
      %s49 = int_to_ptr.vmem [resolvable:$true] %s48
      %54 = dma.hbm_to_vmem [thread:$0]  %s47, 8192, %s49, [#allocation6], 1024, 1024, 64
    $region17: #{tpu_custom_call.1} parent=1 // pred_fallthru
      _
    // Predicated region
    $region18: #{tpu_custom_call.1} parent=1 // pred_check
      _
    $region19: #{tpu_custom_call.1} parent=1 // pred_check_branch
      %56 = sbr.rel (0) target = $region21
    $region20: #{tpu_custom_call.1} parent=1 // pred_region
      %58 = vsyncadd [#allocation9], 0
      %s60 = sshll.u32 %s4, 4
      %s61 = int_to_ptr.hbm [resolvable:$true] %s60
      %s62 = sshll.u32 [#allocation8], 4
      %s63 = int_to_ptr.vmem [resolvable:$true] %s62
      %65 = dma.hbm_to_vmem [thread:$0]  %s61, 256, %s63, [#allocation9]
    $region21: #{tpu_custom_call.1} parent=1 // pred_fallthru
      _
    // Predicated region
    $region22: #{tpu_custom_call.1} parent=1 // pred_check
      _
    $region23: #{tpu_custom_call.1} parent=1 // pred_check_branch
      %67 = sbr.rel (0) target = $region25
    $region24: #{tpu_custom_call.1} parent=1 // pred_region
      %69 = vsyncadd [#allocation9], 0
      %s70 = sshll.u32 %s5, 4
      %s71 = int_to_ptr.hbm [resolvable:$true] %s70
      %s72 = sshll.u32 [#allocation10], 4
      %s73 = int_to_ptr.vmem [resolvable:$true] %s72
      %78 = dma.hbm_to_vmem [thread:$0]  %s71, 16384, %s73, [#allocation9], 64, 64, 4
    $region25: #{tpu_custom_call.1} parent=1 // pred_fallthru
      _
    // Predicated region
    $region26: #{tpu_custom_call.1} parent=1 // pred_check
      _
    $region27: #{tpu_custom_call.1} parent=1 // pred_check_branch
      %80 = sbr.rel (0) target = $region29
    $region28: #{tpu_custom_call.1} parent=1 // pred_region
      _
    $region29: #{tpu_custom_call.1} parent=1 // pred_fallthru
      _
    // Predicated region
    $region30: #{tpu_custom_call.1} parent=1 // pred_check
      _
    $region31: #{tpu_custom_call.1} parent=1 // pred_check_branch
      %82 = sbr.rel (0) target = $region33
    $region32: #{tpu_custom_call.1} parent=1 // pred_region
      %84 = dma.done [#allocation3], 64
    $region33: #{tpu_custom_call.1} parent=1 // pred_fallthru
      _
    // Predicated region
    $region34: #{tpu_custom_call.1} parent=1 // pred_check
      _
    $region35: #{tpu_custom_call.1} parent=1 // pred_check_branch
      %86 = sbr.rel (0) target = $region37
    $region36: #{tpu_custom_call.1} parent=1 // pred_region
      %88 = dma.done [#allocation6], 512
    $region37: #{tpu_custom_call.1} parent=1 // pred_fallthru
      _
    // Predicated region
    $region38: #{tpu_custom_call.1} parent=1 // pred_check
      _
    $region39: #{tpu_custom_call.1} parent=1 // pred_check_branch
      %90 = sbr.rel (0) target = $region41
    $region40: #{tpu_custom_call.1} parent=1 // pred_region
      %92 = dma.done [#allocation6], 8192
    $region41: #{tpu_custom_call.1} parent=1 // pred_fallthru
      _
    // Predicated region
    $region42: #{tpu_custom_call.1} parent=1 // pred_check
      _
    $region43: #{tpu_custom_call.1} parent=1 // pred_check_branch
      %94 = sbr.rel (0) target = $region45
    $region44: #{tpu_custom_call.1} parent=1 // pred_region
      %96 = dma.done [#allocation9], 256
    $region45: #{tpu_custom_call.1} parent=1 // pred_fallthru
      _
    // Predicated region
    $region46: #{tpu_custom_call.1} parent=1 // pred_check
      _
    $region47: #{tpu_custom_call.1} parent=1 // pred_check_branch
      %98 = sbr.rel (0) target = $region49
    $region48: #{tpu_custom_call.1} parent=1 // pred_region
      %100 = dma.done [#allocation9], 16384
    $region49: #{tpu_custom_call.1} parent=1 // pred_fallthru
      _
    %v102 = vld [vmem:[#allocation2] sm:$0xf]
    %v103 = vld [vmem:[#allocation5] sm:$0xf]
    %v104 = vld [vmem:[#allocation5 + $0x4] sm:$0xf]
    %v105 = vld [vmem:[#allocation5 + $0x8] sm:$0xf]
    %v106 = vld [vmem:[#allocation5 + $0xc] sm:$0xf]
    %v107 = vld [vmem:[#allocation5 + $0x10] sm:$0xf]
    %v108 = vld [vmem:[#allocation5 + $0x14] sm:$0xf]
    %v109 = vld [vmem:[#allocation5 + $0x18] sm:$0xf]
    %v110 = vld [vmem:[#allocation5 + $0x1c] sm:$0xf]
    %v111 = vld [vmem:[%s2] sm:$0x1]
    %v113 = vperm.slane %v111, 0
    %v123 = vunpack.c.l.b16 %v103
    %v124 = vunpack.c.l.b16 %v104
    %v125 = vunpack.c.l.b16 %v105
    %v126 = vunpack.c.l.b16 %v106
    %v127 = vunpack.c.l.b16 %v107
    %v128 = vunpack.c.l.b16 %v108
    %v129 = vunpack.c.l.b16 %v109
    %v130 = vunpack.c.l.b16 %v110
    %v131 = vpack.c.b16 %v124, %v123
    %v132 = vpack.c.b16 %v126, %v125
    %v133 = vpack.c.b16 %v128, %v127
    %v134 = vpack.c.b16 %v130, %v129
    %vm139 = vcmask 523264
    %v141 = vsel %vm139, %v102, 0
    %143 = vmatpush.bf16.msra.mxu0 0
    %144 = vmatpush.bf16.msra.mxu0 0
    %145 = vmatpush.bf16.msra.mxu0 0
    %146 = vmatpush.bf16.msra.mxu0 0
    %147 = vmatpush.bf16.msra.mxu0 %v134
    %148 = vmatpush.bf16.msra.mxu0 %v133
    %149 = vmatpush.bf16.msra.mxu0 %v132
    %150 = vmatpush.bf16.msra.mxu0 %v131
    %151 = vmatmul.bf16.gmra.mxu0 %v141
    %v152 = vpop.f32.mrf.mxu0
    %v153 = vadd.f32 %v113, %v152
    %v154 = vpop.f32.mrf.mxu0
    %155 = vdwg.mxu0
    %v156 = vpack.c.bf16 %v153, %v153
    %v157 = vld [vmem:[#allocation7] sm:$0xff]
    %v158 = vld [vmem:[#allocation7 + $0x8] sm:$0xff]
    %v159 = vld [vmem:[#allocation7 + $0x10] sm:$0xff]
    %v160 = vld [vmem:[#allocation7 + $0x18] sm:$0xff]
    %v161 = vld [vmem:[#allocation7 + $0x20] sm:$0xff]
    %v162 = vld [vmem:[#allocation7 + $0x28] sm:$0xff]
    %v163 = vld [vmem:[#allocation7 + $0x30] sm:$0xff]
    %v164 = vld [vmem:[#allocation7 + $0x38] sm:$0xff]
    %v165 = vld [vmem:[#allocation7 + $0x40] sm:$0xff]
    %v166 = vld [vmem:[#allocation7 + $0x48] sm:$0xff]
    %v167 = vld [vmem:[#allocation7 + $0x50] sm:$0xff]
    %v168 = vld [vmem:[#allocation7 + $0x58] sm:$0xff]
    %v169 = vld [vmem:[#allocation7 + $0x60] sm:$0xff]
    %v170 = vld [vmem:[#allocation7 + $0x68] sm:$0xff]
    %v171 = vld [vmem:[#allocation7 + $0x70] sm:$0xff]
    %v172 = vld [vmem:[#allocation7 + $0x78] sm:$0xff]
    %v173 = vld [vmem:[#allocation7 + $0x80] sm:$0xff]
    %v174 = vld [vmem:[#allocation7 + $0x88] sm:$0xff]
    %v175 = vld [vmem:[#allocation7 + $0x90] sm:$0xff]
    %v176 = vld [vmem:[#allocation7 + $0x98] sm:$0xff]
    %v177 = vld [vmem:[#allocation7 + $0xa0] sm:$0xff]
    %v178 = vld [vmem:[#allocation7 + $0xa8] sm:$0xff]
    %v179 = vld [vmem:[#allocation7 + $0xb0] sm:$0xff]
    %v180 = vld [vmem:[#allocation7 + $0xb8] sm:$0xff]
    %v181 = vld [vmem:[#allocation7 + $0xc0] sm:$0xff]
    %v182 = vld [vmem:[#allocation7 + $0xc8] sm:$0xff]
    %v183 = vld [vmem:[#allocation7 + $0xd0] sm:$0xff]
    %v184 = vld [vmem:[#allocation7 + $0xd8] sm:$0xff]
    %v185 = vld [vmem:[#allocation7 + $0xe0] sm:$0xff]
    %v186 = vld [vmem:[#allocation7 + $0xe8] sm:$0xff]
    %v187 = vld [vmem:[#allocation7 + $0xf0] sm:$0xff]
    %v188 = vld [vmem:[#allocation7 + $0xf8] sm:$0xff]
    %v189 = vld [vmem:[#allocation7 + $0x100] sm:$0xff]
    %v190 = vld [vmem:[#allocation7 + $0x108] sm:$0xff]
    %v191 = vld [vmem:[#allocation7 + $0x110] sm:$0xff]
    %v192 = vld [vmem:[#allocation7 + $0x118] sm:$0xff]
    %v193 = vld [vmem:[#allocation7 + $0x120] sm:$0xff]
    %v194 = vld [vmem:[#allocation7 + $0x128] sm:$0xff]
    %v195 = vld [vmem:[#allocation7 + $0x130] sm:$0xff]
    %v196 = vld [vmem:[#allocation7 + $0x138] sm:$0xff]
    %v197 = vld [vmem:[#allocation7 + $0x140] sm:$0xff]
    %v198 = vld [vmem:[#allocation7 + $0x148] sm:$0xff]
    %v199 = vld [vmem:[#allocation7 + $0x150] sm:$0xff]
    %v200 = vld [vmem:[#allocation7 + $0x158] sm:$0xff]
    %v201 = vld [vmem:[#allocation7 + $0x160] sm:$0xff]
    %v202 = vld [vmem:[#allocation7 + $0x168] sm:$0xff]
    %v203 = vld [vmem:[#allocation7 + $0x170] sm:$0xff]
    %v204 = vld [vmem:[#allocation7 + $0x178] sm:$0xff]
    %v205 = vld [vmem:[#allocation7 + $0x180] sm:$0xff]
    %v206 = vld [vmem:[#allocation7 + $0x188] sm:$0xff]
    %v207 = vld [vmem:[#allocation7 + $0x190] sm:$0xff]
    %v208 = vld [vmem:[#allocation7 + $0x198] sm:$0xff]
    %v209 = vld [vmem:[#allocation7 + $0x1a0] sm:$0xff]
    %v210 = vld [vmem:[#allocation7 + $0x1a8] sm:$0xff]
    %v211 = vld [vmem:[#allocation7 + $0x1b0] sm:$0xff]
    %v212 = vld [vmem:[#allocation7 + $0x1b8] sm:$0xff]
    %v213 = vld [vmem:[#allocation7 + $0x1c0] sm:$0xff]
    %v214 = vld [vmem:[#allocation7 + $0x1c8] sm:$0xff]
    %v215 = vld [vmem:[#allocation7 + $0x1d0] sm:$0xff]
    %v216 = vld [vmem:[#allocation7 + $0x1d8] sm:$0xff]
    %v217 = vld [vmem:[#allocation7 + $0x1e0] sm:$0xff]
    %v218 = vld [vmem:[#allocation7 + $0x1e8] sm:$0xff]
    %v219 = vld [vmem:[#allocation7 + $0x1f0] sm:$0xff]
    %v220 = vld [vmem:[#allocation7 + $0x1f8] sm:$0xff]
    %v221 = vld [vmem:[#allocation8] sm:$0xff]
    %v222 = vld [vmem:[#allocation8 + $0x8] sm:$0xff]
    %v225 = vperm.slane %v221, 0
    %v226 = vperm.slane %v221, 1
    %v227 = vperm.slane %v221, 2
    %v228 = vperm.slane %v221, 3
    %v229 = vperm.slane %v221, 4
    %v230 = vperm.slane %v221, 5
    %v231 = vperm.slane %v221, 6
    %v232 = vperm.slane %v221, 7
    %v233 = vperm.slane %v222, 0
    %v234 = vperm.slane %v222, 1
    %v235 = vperm.slane %v222, 2
    %v236 = vperm.slane %v222, 3
    %v237 = vperm.slane %v222, 4
    %v238 = vperm.slane %v222, 5
    %v239 = vperm.slane %v222, 6
    %v240 = vperm.slane %v222, 7
    %v321 = vunpack.c.l.b16 %v157
    %v322 = vunpack.c.h.b16 %v157
    %v323 = vunpack.c.l.b16 %v158
    %v324 = vunpack.c.h.b16 %v158
    %v325 = vunpack.c.l.b16 %v159
    %v326 = vunpack.c.h.b16 %v159
    %v327 = vunpack.c.l.b16 %v160
    %v328 = vunpack.c.h.b16 %v160
    %v329 = vunpack.c.l.b16 %v161
    %v330 = vunpack.c.h.b16 %v161
    %v331 = vunpack.c.l.b16 %v162
    %v332 = vunpack.c.h.b16 %v162
    %v333 = vunpack.c.l.b16 %v163
    %v334 = vunpack.c.h.b16 %v163
    %v335 = vunpack.c.l.b16 %v164
    %v336 = vunpack.c.h.b16 %v164
    %v337 = vunpack.c.l.b16 %v165
    %v338 = vunpack.c.h.b16 %v165
    %v339 = vunpack.c.l.b16 %v166
    %v340 = vunpack.c.h.b16 %v166
    %v341 = vunpack.c.l.b16 %v167
    %v342 = vunpack.c.h.b16 %v167
    %v343 = vunpack.c.l.b16 %v168
    %v344 = vunpack.c.h.b16 %v168
    %v345 = vunpack.c.l.b16 %v169
    %v346 = vunpack.c.h.b16 %v169
    %v347 = vunpack.c.l.b16 %v170
    %v348 = vunpack.c.h.b16 %v170
    %v349 = vunpack.c.l.b16 %v171
    %v350 = vunpack.c.h.b16 %v171
    %v351 = vunpack.c.l.b16 %v172
    %v352 = vunpack.c.h.b16 %v172
    %v353 = vunpack.c.l.b16 %v173
    %v354 = vunpack.c.h.b16 %v173
    %v355 = vunpack.c.l.b16 %v174
    %v356 = vunpack.c.h.b16 %v174
    %v357 = vunpack.c.l.b16 %v175
    %v358 = vunpack.c.h.b16 %v175
    %v359 = vunpack.c.l.b16 %v176
    %v360 = vunpack.c.h.b16 %v176
    %v361 = vunpack.c.l.b16 %v177
    %v362 = vunpack.c.h.b16 %v177
    %v363 = vunpack.c.l.b16 %v178
    %v364 = vunpack.c.h.b16 %v178
    %v365 = vunpack.c.l.b16 %v179
    %v366 = vunpack.c.h.b16 %v179
    %v367 = vunpack.c.l.b16 %v180
    %v368 = vunpack.c.h.b16 %v180
    %v369 = vunpack.c.l.b16 %v181
    %v370 = vunpack.c.h.b16 %v181
    %v371 = vunpack.c.l.b16 %v182
    %v372 = vunpack.c.h.b16 %v182
    %v373 = vunpack.c.l.b16 %v183
    %v374 = vunpack.c.h.b16 %v183
    %v375 = vunpack.c.l.b16 %v184
    %v376 = vunpack.c.h.b16 %v184
    %v377 = vunpack.c.l.b16 %v185
    %v378 = vunpack.c.h.b16 %v185
    %v379 = vunpack.c.l.b16 %v186
    %v380 = vunpack.c.h.b16 %v186
    %v381 = vunpack.c.l.b16 %v187
    %v382 = vunpack.c.h.b16 %v187
    %v383 = vunpack.c.l.b16 %v188
    %v384 = vunpack.c.h.b16 %v188
    %v385 = vunpack.c.l.b16 %v189
    %v386 = vunpack.c.h.b16 %v189
    %v387 = vunpack.c.l.b16 %v190
    %v388 = vunpack.c.h.b16 %v190
    %v389 = vunpack.c.l.b16 %v191
    %v390 = vunpack.c.h.b16 %v191
    %v391 = vunpack.c.l.b16 %v192
    %v392 = vunpack.c.h.b16 %v192
    %v393 = vunpack.c.l.b16 %v193
    %v394 = vunpack.c.h.b16 %v193
    %v395 = vunpack.c.l.b16 %v194
    %v396 = vunpack.c.h.b16 %v194
    %v397 = vunpack.c.l.b16 %v195
    %v398 = vunpack.c.h.b16 %v195
    %v399 = vunpack.c.l.b16 %v196
    %v400 = vunpack.c.h.b16 %v196
    %v401 = vunpack.c.l.b16 %v197
    %v402 = vunpack.c.h.b16 %v197
    %v403 = vunpack.c.l.b16 %v198
    %v404 = vunpack.c.h.b16 %v198
    %v405 = vunpack.c.l.b16 %v199
    %v406 = vunpack.c.h.b16 %v199
    %v407 = vunpack.c.l.b16 %v200
    %v408 = vunpack.c.h.b16 %v200
    %v409 = vunpack.c.l.b16 %v201
    %v410 = vunpack.c.h.b16 %v201
    %v411 = vunpack.c.l.b16 %v202
    %v412 = vunpack.c.h.b16 %v202
    %v413 = vunpack.c.l.b16 %v203
    %v414 = vunpack.c.h.b16 %v203
    %v415 = vunpack.c.l.b16 %v204
    %v416 = vunpack.c.h.b16 %v204
    %v417 = vunpack.c.l.b16 %v205
    %v418 = vunpack.c.h.b16 %v205
    %v419 = vunpack.c.l.b16 %v206
    %v420 = vunpack.c.h.b16 %v206
    %v421 = vunpack.c.l.b16 %v207
    %v422 = vunpack.c.h.b16 %v207
    %v423 = vunpack.c.l.b16 %v208
    %v424 = vunpack.c.h.b16 %v208
    %v425 = vunpack.c.l.b16 %v209
    %v426 = vunpack.c.h.b16 %v209
    %v427 = vunpack.c.l.b16 %v210
    %v428 = vunpack.c.h.b16 %v210
    %v429 = vunpack.c.l.b16 %v211
    %v430 = vunpack.c.h.b16 %v211
    %v431 = vunpack.c.l.b16 %v212
    %v432 = vunpack.c.h.b16 %v212
    %v433 = vunpack.c.l.b16 %v213
    %v434 = vunpack.c.h.b16 %v213
    %v435 = vunpack.c.l.b16 %v214
    %v436 = vunpack.c.h.b16 %v214
    %v437 = vunpack.c.l.b16 %v215
    %v438 = vunpack.c.h.b16 %v215
    %v439 = vunpack.c.l.b16 %v216
    %v440 = vunpack.c.h.b16 %v216
    %v441 = vunpack.c.l.b16 %v217
    %v442 = vunpack.c.h.b16 %v217
    %v443 = vunpack.c.l.b16 %v218
    %v444 = vunpack.c.h.b16 %v218
    %v445 = vunpack.c.l.b16 %v219
    %v446 = vunpack.c.h.b16 %v219
    %v447 = vunpack.c.l.b16 %v220
    %v448 = vunpack.c.h.b16 %v220
    %v449 = vpack.c.b16 %v337, %v321
    %v450 = vpack.c.b16 %v338, %v322
    %v451 = vpack.c.b16 %v339, %v323
    %v452 = vpack.c.b16 %v340, %v324
    %v453 = vpack.c.b16 %v341, %v325
    %v454 = vpack.c.b16 %v342, %v326
    %v455 = vpack.c.b16 %v343, %v327
    %v456 = vpack.c.b16 %v344, %v328
    %v457 = vpack.c.b16 %v345, %v329
    %v458 = vpack.c.b16 %v346, %v330
    %v459 = vpack.c.b16 %v347, %v331
    %v460 = vpack.c.b16 %v348, %v332
    %v461 = vpack.c.b16 %v349, %v333
    %v462 = vpack.c.b16 %v350, %v334
    %v463 = vpack.c.b16 %v351, %v335
    %v464 = vpack.c.b16 %v352, %v336
    %v465 = vpack.c.b16 %v369, %v353
    %v466 = vpack.c.b16 %v370, %v354
    %v467 = vpack.c.b16 %v371, %v355
    %v468 = vpack.c.b16 %v372, %v356
    %v469 = vpack.c.b16 %v373, %v357
    %v470 = vpack.c.b16 %v374, %v358
    %v471 = vpack.c.b16 %v375, %v359
    %v472 = vpack.c.b16 %v376, %v360
    %v473 = vpack.c.b16 %v377, %v361
    %v474 = vpack.c.b16 %v378, %v362
    %v475 = vpack.c.b16 %v379, %v363
    %v476 = vpack.c.b16 %v380, %v364
    %v477 = vpack.c.b16 %v381, %v365
    %v478 = vpack.c.b16 %v382, %v366
    %v479 = vpack.c.b16 %v383, %v367
    %v480 = vpack.c.b16 %v384, %v368
    %v481 = vpack.c.b16 %v401, %v385
    %v482 = vpack.c.b16 %v402, %v386
    %v483 = vpack.c.b16 %v403, %v387
    %v484 = vpack.c.b16 %v404, %v388
    %v485 = vpack.c.b16 %v405, %v389
    %v486 = vpack.c.b16 %v406, %v390
    %v487 = vpack.c.b16 %v407, %v391
    %v488 = vpack.c.b16 %v408, %v392
    %v489 = vpack.c.b16 %v409, %v393
    %v490 = vpack.c.b16 %v410, %v394
    %v491 = vpack.c.b16 %v411, %v395
    %v492 = vpack.c.b16 %v412, %v396
    %v493 = vpack.c.b16 %v413, %v397
    %v494 = vpack.c.b16 %v414, %v398
    %v495 = vpack.c.b16 %v415, %v399
    %v496 = vpack.c.b16 %v416, %v400
    %v497 = vpack.c.b16 %v433, %v417
    %v498 = vpack.c.b16 %v434, %v418
    %v499 = vpack.c.b16 %v435, %v419
    %v500 = vpack.c.b16 %v436, %v420
    %v501 = vpack.c.b16 %v437, %v421
    %v502 = vpack.c.b16 %v438, %v422
    %v503 = vpack.c.b16 %v439, %v423
    %v504 = vpack.c.b16 %v440, %v424
    %v505 = vpack.c.b16 %v441, %v425
    %v506 = vpack.c.b16 %v442, %v426
    %v507 = vpack.c.b16 %v443, %v427
    %v508 = vpack.c.b16 %v444, %v428
    %v509 = vpack.c.b16 %v445, %v429
    %v510 = vpack.c.b16 %v446, %v430
    %v511 = vpack.c.b16 %v447, %v431
    %v512 = vpack.c.b16 %v448, %v432
    %v578 = vsel %vm139, %v156, 0
    %580 = vmatpush.bf16.msra.mxu0 0
    %581 = vmatpush.bf16.msra.mxu0 0
    %582 = vmatpush.bf16.msra.mxu0 0
    %583 = vmatpush.bf16.msra.mxu0 0
    %584 = vmatpush.bf16.msra.mxu0 %v497
    %585 = vmatpush.bf16.msra.mxu0 %v481
    %586 = vmatpush.bf16.msra.mxu0 %v465
    %587 = vmatpush.bf16.msra.mxu0 %v449
    %588 = vmatmul.bf16.gmra.mxu0 %v578
    %v589 = vpop.f32.mrf.mxu0
    %v590 = vadd.f32 %v225, %v589
    %v591 = vpop.f32.mrf.mxu0
    %592 = vdwg.mxu0
    %593 = vmatpush.bf16.msra.mxu0 0
    %594 = vmatpush.bf16.msra.mxu0 0
    %595 = vmatpush.bf16.msra.mxu0 0
    %596 = vmatpush.bf16.msra.mxu0 0
    %597 = vmatpush.bf16.msra.mxu0 %v498
    %598 = vmatpush.bf16.msra.mxu0 %v482
    %599 = vmatpush.bf16.msra.mxu0 %v466
    %600 = vmatpush.bf16.msra.mxu0 %v450
    %601 = vmatmul.bf16.gmra.mxu0 %v578
    %v602 = vpop.f32.mrf.mxu0
    %v603 = vadd.f32 %v226, %v602
    %v604 = vpop.f32.mrf.mxu0
    %605 = vdwg.mxu0
    %606 = vmatpush.bf16.msra.mxu0 0
    %607 = vmatpush.bf16.msra.mxu0 0
    %608 = vmatpush.bf16.msra.mxu0 0
    %609 = vmatpush.bf16.msra.mxu0 0
    %610 = vmatpush.bf16.msra.mxu0 %v499
    %611 = vmatpush.bf16.msra.mxu0 %v483
    %612 = vmatpush.bf16.msra.mxu0 %v467
    %613 = vmatpush.bf16.msra.mxu0 %v451
    %614 = vmatmul.bf16.gmra.mxu0 %v578
    %v615 = vpop.f32.mrf.mxu0
    %v616 = vadd.f32 %v227, %v615
    %v617 = vpop.f32.mrf.mxu0
    %618 = vdwg.mxu0
    %619 = vmatpush.bf16.msra.mxu0 0
    %620 = vmatpush.bf16.msra.mxu0 0
    %621 = vmatpush.bf16.msra.mxu0 0
    %622 = vmatpush.bf16.msra.mxu0 0
    %623 = vmatpush.bf16.msra.mxu0 %v500
    %624 = vmatpush.bf16.msra.mxu0 %v484
    %625 = vmatpush.bf16.msra.mxu0 %v468
    %626 = vmatpush.bf16.msra.mxu0 %v452
    %627 = vmatmul.bf16.gmra.mxu0 %v578
    %v628 = vpop.f32.mrf.mxu0
    %v629 = vadd.f32 %v228, %v628
    %v630 = vpop.f32.mrf.mxu0
    %631 = vdwg.mxu0
    %632 = vmatpush.bf16.msra.mxu0 0
    %633 = vmatpush.bf16.msra.mxu0 0
    %634 = vmatpush.bf16.msra.mxu0 0
    %635 = vmatpush.bf16.msra.mxu0 0
    %636 = vmatpush.bf16.msra.mxu0 %v501
    %637 = vmatpush.bf16.msra.mxu0 %v485
    %638 = vmatpush.bf16.msra.mxu0 %v469
    %639 = vmatpush.bf16.msra.mxu0 %v453
    %640 = vmatmul.bf16.gmra.mxu0 %v578
    %v641 = vpop.f32.mrf.mxu0
    %v642 = vadd.f32 %v229, %v641
    %v643 = vpop.f32.mrf.mxu0
    %644 = vdwg.mxu0
    %645 = vmatpush.bf16.msra.mxu0 0
    %646 = vmatpush.bf16.msra.mxu0 0
    %647 = vmatpush.bf16.msra.mxu0 0
    %648 = vmatpush.bf16.msra.mxu0 0
    %649 = vmatpush.bf16.msra.mxu0 %v502
    %650 = vmatpush.bf16.msra.mxu0 %v486
    %651 = vmatpush.bf16.msra.mxu0 %v470
    %652 = vmatpush.bf16.msra.mxu0 %v454
    %653 = vmatmul.bf16.gmra.mxu0 %v578
    %v654 = vpop.f32.mrf.mxu0
    %v655 = vadd.f32 %v230, %v654
    %v656 = vpop.f32.mrf.mxu0
    %657 = vdwg.mxu0
    %658 = vmatpush.bf16.msra.mxu0 0
    %659 = vmatpush.bf16.msra.mxu0 0
    %660 = vmatpush.bf16.msra.mxu0 0
    %661 = vmatpush.bf16.msra.mxu0 0
    %662 = vmatpush.bf16.msra.mxu0 %v503
    %663 = vmatpush.bf16.msra.mxu0 %v487
    %664 = vmatpush.bf16.msra.mxu0 %v471
    %665 = vmatpush.bf16.msra.mxu0 %v455
    %666 = vmatmul.bf16.gmra.mxu0 %v578
    %v667 = vpop.f32.mrf.mxu0
    %v668 = vadd.f32 %v231, %v667
    %v669 = vpop.f32.mrf.mxu0
    %670 = vdwg.mxu0
    %671 = vmatpush.bf16.msra.mxu0 0
    %672 = vmatpush.bf16.msra.mxu0 0
    %673 = vmatpush.bf16.msra.mxu0 0
    %674 = vmatpush.bf16.msra.mxu0 0
    %675 = vmatpush.bf16.msra.mxu0 %v504
    %676 = vmatpush.bf16.msra.mxu0 %v488
    %677 = vmatpush.bf16.msra.mxu0 %v472
    %678 = vmatpush.bf16.msra.mxu0 %v456
    %679 = vmatmul.bf16.gmra.mxu0 %v578
    %v680 = vpop.f32.mrf.mxu0
    %v681 = vadd.f32 %v232, %v680
    %v682 = vpop.f32.mrf.mxu0
    %683 = vdwg.mxu0
    %684 = vmatpush.bf16.msra.mxu0 0
    %685 = vmatpush.bf16.msra.mxu0 0
    %686 = vmatpush.bf16.msra.mxu0 0
    %687 = vmatpush.bf16.msra.mxu0 0
    %688 = vmatpush.bf16.msra.mxu0 %v505
    %689 = vmatpush.bf16.msra.mxu0 %v489
    %690 = vmatpush.bf16.msra.mxu0 %v473
    %691 = vmatpush.bf16.msra.mxu0 %v457
    %692 = vmatmul.bf16.gmra.mxu0 %v578
    %v693 = vpop.f32.mrf.mxu0
    %v694 = vadd.f32 %v233, %v693
    %v695 = vpop.f32.mrf.mxu0
    %696 = vdwg.mxu0
    %697 = vmatpush.bf16.msra.mxu0 0
    %698 = vmatpush.bf16.msra.mxu0 0
    %699 = vmatpush.bf16.msra.mxu0 0
    %700 = vmatpush.bf16.msra.mxu0 0
    %701 = vmatpush.bf16.msra.mxu0 %v506
    %702 = vmatpush.bf16.msra.mxu0 %v490
    %703 = vmatpush.bf16.msra.mxu0 %v474
    %704 = vmatpush.bf16.msra.mxu0 %v458
    %705 = vmatmul.bf16.gmra.mxu0 %v578
    %v706 = vpop.f32.mrf.mxu0
    %v707 = vadd.f32 %v234, %v706
    %v708 = vpop.f32.mrf.mxu0
    %709 = vdwg.mxu0
    %710 = vmatpush.bf16.msra.mxu0 0
    %711 = vmatpush.bf16.msra.mxu0 0
    %712 = vmatpush.bf16.msra.mxu0 0
    %713 = vmatpush.bf16.msra.mxu0 0
    %714 = vmatpush.bf16.msra.mxu0 %v507
    %715 = vmatpush.bf16.msra.mxu0 %v491
    %716 = vmatpush.bf16.msra.mxu0 %v475
    %717 = vmatpush.bf16.msra.mxu0 %v459
    %718 = vmatmul.bf16.gmra.mxu0 %v578
    %v719 = vpop.f32.mrf.mxu0
    %v720 = vadd.f32 %v235, %v719
    %v721 = vpop.f32.mrf.mxu0
    %722 = vdwg.mxu0
    %723 = vmatpush.bf16.msra.mxu0 0
    %724 = vmatpush.bf16.msra.mxu0 0
    %725 = vmatpush.bf16.msra.mxu0 0
    %726 = vmatpush.bf16.msra.mxu0 0
    %727 = vmatpush.bf16.msra.mxu0 %v508
    %728 = vmatpush.bf16.msra.mxu0 %v492
    %729 = vmatpush.bf16.msra.mxu0 %v476
    %730 = vmatpush.bf16.msra.mxu0 %v460
    %731 = vmatmul.bf16.gmra.mxu0 %v578
    %v732 = vpop.f32.mrf.mxu0
    %v733 = vadd.f32 %v236, %v732
    %v734 = vpop.f32.mrf.mxu0
    %735 = vdwg.mxu0
    %736 = vmatpush.bf16.msra.mxu0 0
    %737 = vmatpush.bf16.msra.mxu0 0
    %738 = vmatpush.bf16.msra.mxu0 0
    %739 = vmatpush.bf16.msra.mxu0 0
    %740 = vmatpush.bf16.msra.mxu0 %v509
    %741 = vmatpush.bf16.msra.mxu0 %v493
    %742 = vmatpush.bf16.msra.mxu0 %v477
    %743 = vmatpush.bf16.msra.mxu0 %v461
    %744 = vmatmul.bf16.gmra.mxu0 %v578
    %v745 = vpop.f32.mrf.mxu0
    %v746 = vadd.f32 %v237, %v745
    %v747 = vpop.f32.mrf.mxu0
    %748 = vdwg.mxu0
    %749 = vmatpush.bf16.msra.mxu0 0
    %750 = vmatpush.bf16.msra.mxu0 0
    %751 = vmatpush.bf16.msra.mxu0 0
    %752 = vmatpush.bf16.msra.mxu0 0
    %753 = vmatpush.bf16.msra.mxu0 %v510
    %754 = vmatpush.bf16.msra.mxu0 %v494
    %755 = vmatpush.bf16.msra.mxu0 %v478
    %756 = vmatpush.bf16.msra.mxu0 %v462
    %757 = vmatmul.bf16.gmra.mxu0 %v578
    %v758 = vpop.f32.mrf.mxu0
    %v759 = vadd.f32 %v238, %v758
    %v760 = vpop.f32.mrf.mxu0
    %761 = vdwg.mxu0
    %762 = vmatpush.bf16.msra.mxu0 0
    %763 = vmatpush.bf16.msra.mxu0 0
    %764 = vmatpush.bf16.msra.mxu0 0
    %765 = vmatpush.bf16.msra.mxu0 0
    %766 = vmatpush.bf16.msra.mxu0 %v511
    %767 = vmatpush.bf16.msra.mxu0 %v495
    %768 = vmatpush.bf16.msra.mxu0 %v479
    %769 = vmatpush.bf16.msra.mxu0 %v463
    %770 = vmatmul.bf16.gmra.mxu0 %v578
    %v771 = vpop.f32.mrf.mxu0
    %v772 = vadd.f32 %v239, %v771
    %v773 = vpop.f32.mrf.mxu0
    %774 = vdwg.mxu0
    %775 = vmatpush.bf16.msra.mxu0 0
    %776 = vmatpush.bf16.msra.mxu0 0
    %777 = vmatpush.bf16.msra.mxu0 0
    %778 = vmatpush.bf16.msra.mxu0 0
    %779 = vmatpush.bf16.msra.mxu0 %v512
    %780 = vmatpush.bf16.msra.mxu0 %v496
    %781 = vmatpush.bf16.msra.mxu0 %v480
    %782 = vmatpush.bf16.msra.mxu0 %v464
    %783 = vmatmul.bf16.gmra.mxu0 %v578
    %v784 = vpop.f32.mrf.mxu0
    %v785 = vadd.f32 %v240, %v784
    %v786 = vpop.f32.mrf.mxu0
    %787 = vdwg.mxu0
    %v788 = vmul.f32 %v590, 0.5
    %v789 = vmul.f32 %v603, 0.5
    %v790 = vmul.f32 %v616, 0.5
    %v791 = vmul.f32 %v629, 0.5
    %v792 = vmul.f32 %v642, 0.5
    %v793 = vmul.f32 %v655, 0.5
    %v794 = vmul.f32 %v668, 0.5
    %v795 = vmul.f32 %v681, 0.5
    %v796 = vmul.f32 %v694, 0.5
    %v797 = vmul.f32 %v707, 0.5
    %v798 = vmul.f32 %v720, 0.5
    %v799 = vmul.f32 %v733, 0.5
    %v800 = vmul.f32 %v746, 0.5
    %v801 = vmul.f32 %v759, 0.5
    %v802 = vmul.f32 %v772, 0.5
    %v803 = vmul.f32 %v785, 0.5
    %v804 = vmul.f32 %v590, 0.70710677
    %v805 = vmul.f32 %v603, 0.70710677
    %v806 = vmul.f32 %v616, 0.70710677
    %v807 = vmul.f32 %v629, 0.70710677
    %v808 = vmul.f32 %v642, 0.70710677
    %v809 = vmul.f32 %v655, 0.70710677
    %v810 = vmul.f32 %v668, 0.70710677
    %v811 = vmul.f32 %v681, 0.70710677
    %v812 = vmul.f32 %v694, 0.70710677
    %v813 = vmul.f32 %v707, 0.70710677
    %v814 = vmul.f32 %v720, 0.70710677
    %v815 = vmul.f32 %v733, 0.70710677
    %v816 = vmul.f32 %v746, 0.70710677
    %v817 = vmul.f32 %v759, 0.70710677
    %v818 = vmul.f32 %v772, 0.70710677
    %v819 = vmul.f32 %v785, 0.70710677
    %v820 = vmul.f32 %v804, %v804
    %v821 = vmin.f32 16.0, %v820
    %v822 = vmul.f32 %v821, 2.1237322e-06
    %v823 = vadd.f32 %v822, 0.00028619796
    %v824 = vmul.f32 %v821, %v823
    %v825 = vadd.f32 %v824, 0.0036580483
    %v826 = vmul.f32 %v821, %v825
    %v827 = vadd.f32 %v826, 0.05243302
    %v828 = vmul.f32 %v821, %v827
    %v829 = vadd.f32 %v828, 0.18741608
    %v830 = vmul.f32 %v821, %v829
    %v831 = vadd.f32 %v830, 1.1283791
    %v832 = vmul.f32 %v804, %v831
    %v833 = vmul.f32 %v821, 3.8918573e-05
    %v834 = vadd.f32 %v833, 0.001143296
    %v835 = vmul.f32 %v821, %v834
    %v836 = vadd.f32 %v835, 0.014752088
    %v837 = vmul.f32 %v821, %v836
    %v838 = vadd.f32 %v837, 0.112945676
    %v839 = vmul.f32 %v821, %v838
    %v840 = vadd.f32 %v839, 0.4994258
    %v841 = vmul.f32 %v821, %v840
    %v842 = vadd.f32 %v841, 1.0
    %v843 = vrcp.pop %v842
    %v844 = vmul.f32 %v842, %v843
    %v845 = vsub.f32 1.0, %v844
    %v846 = vmul.f32 %v843, %v845
    %v847 = vadd.f32 %v843, %v846
    %vm848 = vweird.f32 %v842
    %vm849 = vweird.f32 %v843
    %vm850 = vmor %vm848, %vm849
    %v851 = vsel %vm850, %v843, %v847
    %v852 = vand.u32 2147483647, %v842
    %vm853 = vcmp.eq.f32.partialorder %v852, 8.507059e+37
    %v854 = vand.u32 %v842, 2147483648
    %v855 = vor.u32 1.1754944e-38, %v854
    %v856 = vsel %vm853, %v855, %v851
    %v857 = vmul.f32 %v832, %v856
    %v858 = vmin.f32 %v857, 1.0
    %v859 = vmax.f32 %v858, -1.0
    %v860 = vmul.f32 %v805, %v805
    %v861 = vmin.f32 16.0, %v860
    %v862 = vmul.f32 %v861, 2.1237322e-06
    %v863 = vadd.f32 %v862, 0.00028619796
    %v864 = vmul.f32 %v861, %v863
    %v865 = vadd.f32 %v864, 0.0036580483
    %v866 = vmul.f32 %v861, %v865
    %v867 = vadd.f32 %v866, 0.05243302
    %v868 = vmul.f32 %v861, %v867
    %v869 = vadd.f32 %v868, 0.18741608
    %v870 = vmul.f32 %v861, %v869
    %v871 = vadd.f32 %v870, 1.1283791
    %v872 = vmul.f32 %v805, %v871
    %v873 = vmul.f32 %v861, 3.8918573e-05
    %v874 = vadd.f32 %v873, 0.001143296
    %v875 = vmul.f32 %v861, %v874
    %v876 = vadd.f32 %v875, 0.014752088
    %v877 = vmul.f32 %v861, %v876
    %v878 = vadd.f32 %v877, 0.112945676
    %v879 = vmul.f32 %v861, %v878
    %v880 = vadd.f32 %v879, 0.4994258
    %v881 = vmul.f32 %v861, %v880
    %v882 = vadd.f32 %v881, 1.0
    %v883 = vrcp.pop %v882
    %v884 = vmul.f32 %v882, %v883
    %v885 = vsub.f32 1.0, %v884
    %v886 = vmul.f32 %v883, %v885
    %v887 = vadd.f32 %v883, %v886
    %vm888 = vweird.f32 %v882
    %vm889 = vweird.f32 %v883
    %vm890 = vmor %vm888, %vm889
    %v891 = vsel %vm890, %v883, %v887
    %v892 = vand.u32 2147483647, %v882
    %vm893 = vcmp.eq.f32.partialorder %v892, 8.507059e+37
    %v894 = vand.u32 %v882, 2147483648
    %v895 = vor.u32 1.1754944e-38, %v894
    %v896 = vsel %vm893, %v895, %v891
    %v897 = vmul.f32 %v872, %v896
    %v898 = vmin.f32 %v897, 1.0
    %v899 = vmax.f32 %v898, -1.0
    %v900 = vmul.f32 %v806, %v806
    %v901 = vmin.f32 16.0, %v900
    %v902 = vmul.f32 %v901, 2.1237322e-06
    %v903 = vadd.f32 %v902, 0.00028619796
    %v904 = vmul.f32 %v901, %v903
    %v905 = vadd.f32 %v904, 0.0036580483
    %v906 = vmul.f32 %v901, %v905
    %v907 = vadd.f32 %v906, 0.05243302
    %v908 = vmul.f32 %v901, %v907
    %v909 = vadd.f32 %v908, 0.18741608
    %v910 = vmul.f32 %v901, %v909
    %v911 = vadd.f32 %v910, 1.1283791
    %v912 = vmul.f32 %v806, %v911
    %v913 = vmul.f32 %v901, 3.8918573e-05
    %v914 = vadd.f32 %v913, 0.001143296
    %v915 = vmul.f32 %v901, %v914
    %v916 = vadd.f32 %v915, 0.014752088
    %v917 = vmul.f32 %v901, %v916
    %v918 = vadd.f32 %v917, 0.112945676
    %v919 = vmul.f32 %v901, %v918
    %v920 = vadd.f32 %v919, 0.4994258
    %v921 = vmul.f32 %v901, %v920
    %v922 = vadd.f32 %v921, 1.0
    %v923 = vrcp.pop %v922
    %v924 = vmul.f32 %v922, %v923
    %v925 = vsub.f32 1.0, %v924
    %v926 = vmul.f32 %v923, %v925
    %v927 = vadd.f32 %v923, %v926
    %vm928 = vweird.f32 %v922
    %vm929 = vweird.f32 %v923
    %vm930 = vmor %vm928, %vm929
    %v931 = vsel %vm930, %v923, %v927
    %v932 = vand.u32 2147483647, %v922
    %vm933 = vcmp.eq.f32.partialorder %v932, 8.507059e+37
    %v934 = vand.u32 %v922, 2147483648
    %v935 = vor.u32 1.1754944e-38, %v934
    %v936 = vsel %vm933, %v935, %v931
    %v937 = vmul.f32 %v912, %v936
    %v938 = vmin.f32 %v937, 1.0
    %v939 = vmax.f32 %v938, -1.0
    %v940 = vmul.f32 %v807, %v807
    %v941 = vmin.f32 16.0, %v940
    %v942 = vmul.f32 %v941, 2.1237322e-06
    %v943 = vadd.f32 %v942, 0.00028619796
    %v944 = vmul.f32 %v941, %v943
    %v945 = vadd.f32 %v944, 0.0036580483
    %v946 = vmul.f32 %v941, %v945
    %v947 = vadd.f32 %v946, 0.05243302
    %v948 = vmul.f32 %v941, %v947
    %v949 = vadd.f32 %v948, 0.18741608
    %v950 = vmul.f32 %v941, %v949
    %v951 = vadd.f32 %v950, 1.1283791
    %v952 = vmul.f32 %v807, %v951
    %v953 = vmul.f32 %v941, 3.8918573e-05
    %v954 = vadd.f32 %v953, 0.001143296
    %v955 = vmul.f32 %v941, %v954
    %v956 = vadd.f32 %v955, 0.014752088
    %v957 = vmul.f32 %v941, %v956
    %v958 = vadd.f32 %v957, 0.112945676
    %v959 = vmul.f32 %v941, %v958
    %v960 = vadd.f32 %v959, 0.4994258
    %v961 = vmul.f32 %v941, %v960
    %v962 = vadd.f32 %v961, 1.0
    %v963 = vrcp.pop %v962
    %v964 = vmul.f32 %v962, %v963
    %v965 = vsub.f32 1.0, %v964
    %v966 = vmul.f32 %v963, %v965
    %v967 = vadd.f32 %v963, %v966
    %vm968 = vweird.f32 %v962
    %vm969 = vweird.f32 %v963
    %vm970 = vmor %vm968, %vm969
    %v971 = vsel %vm970, %v963, %v967
    %v972 = vand.u32 2147483647, %v962
    %vm973 = vcmp.eq.f32.partialorder %v972, 8.507059e+37
    %v974 = vand.u32 %v962, 2147483648
    %v975 = vor.u32 1.1754944e-38, %v974
    %v976 = vsel %vm973, %v975, %v971
    %v977 = vmul.f32 %v952, %v976
    %v978 = vmin.f32 %v977, 1.0
    %v979 = vmax.f32 %v978, -1.0
    %v980 = vmul.f32 %v808, %v808
    %v981 = vmin.f32 16.0, %v980
    %v982 = vmul.f32 %v981, 2.1237322e-06
    %v983 = vadd.f32 %v982, 0.00028619796
    %v984 = vmul.f32 %v981, %v983
    %v985 = vadd.f32 %v984, 0.0036580483
    %v986 = vmul.f32 %v981, %v985
    %v987 = vadd.f32 %v986, 0.05243302
    %v988 = vmul.f32 %v981, %v987
    %v989 = vadd.f32 %v988, 0.18741608
    %v990 = vmul.f32 %v981, %v989
    %v991 = vadd.f32 %v990, 1.1283791
    %v992 = vmul.f32 %v808, %v991
    %v993 = vmul.f32 %v981, 3.8918573e-05
    %v994 = vadd.f32 %v993, 0.001143296
    %v995 = vmul.f32 %v981, %v994
    %v996 = vadd.f32 %v995, 0.014752088
    %v997 = vmul.f32 %v981, %v996
    %v998 = vadd.f32 %v997, 0.112945676
    %v999 = vmul.f32 %v981, %v998
    %v1000 = vadd.f32 %v999, 0.4994258
    %v1001 = vmul.f32 %v981, %v1000
    %v1002 = vadd.f32 %v1001, 1.0
    %v1003 = vrcp.pop %v1002
    %v1004 = vmul.f32 %v1002, %v1003
    %v1005 = vsub.f32 1.0, %v1004
    %v1006 = vmul.f32 %v1003, %v1005
    %v1007 = vadd.f32 %v1003, %v1006
    %vm1008 = vweird.f32 %v1002
    %vm1009 = vweird.f32 %v1003
    %vm1010 = vmor %vm1008, %vm1009
    %v1011 = vsel %vm1010, %v1003, %v1007
    %v1012 = vand.u32 2147483647, %v1002
    %vm1013 = vcmp.eq.f32.partialorder %v1012, 8.507059e+37
    %v1014 = vand.u32 %v1002, 2147483648
    %v1015 = vor.u32 1.1754944e-38, %v1014
    %v1016 = vsel %vm1013, %v1015, %v1011
    %v1017 = vmul.f32 %v992, %v1016
    %v1018 = vmin.f32 %v1017, 1.0
    %v1019 = vmax.f32 %v1018, -1.0
    %v1020 = vmul.f32 %v809, %v809
    %v1021 = vmin.f32 16.0, %v1020
    %v1022 = vmul.f32 %v1021, 2.1237322e-06
    %v1023 = vadd.f32 %v1022, 0.00028619796
    %v1024 = vmul.f32 %v1021, %v1023
    %v1025 = vadd.f32 %v1024, 0.0036580483
    %v1026 = vmul.f32 %v1021, %v1025
    %v1027 = vadd.f32 %v1026, 0.05243302
    %v1028 = vmul.f32 %v1021, %v1027
    %v1029 = vadd.f32 %v1028, 0.18741608
    %v1030 = vmul.f32 %v1021, %v1029
    %v1031 = vadd.f32 %v1030, 1.1283791
    %v1032 = vmul.f32 %v809, %v1031
    %v1033 = vmul.f32 %v1021, 3.8918573e-05
    %v1034 = vadd.f32 %v1033, 0.001143296
    %v1035 = vmul.f32 %v1021, %v1034
    %v1036 = vadd.f32 %v1035, 0.014752088
    %v1037 = vmul.f32 %v1021, %v1036
    %v1038 = vadd.f32 %v1037, 0.112945676
    %v1039 = vmul.f32 %v1021, %v1038
    %v1040 = vadd.f32 %v1039, 0.4994258
    %v1041 = vmul.f32 %v1021, %v1040
    %v1042 = vadd.f32 %v1041, 1.0
    %v1043 = vrcp.pop %v1042
    %v1044 = vmul.f32 %v1042, %v1043
    %v1045 = vsub.f32 1.0, %v1044
    %v1046 = vmul.f32 %v1043, %v1045
    %v1047 = vadd.f32 %v1043, %v1046
    %vm1048 = vweird.f32 %v1042
    %vm1049 = vweird.f32 %v1043
    %vm1050 = vmor %vm1048, %vm1049
    %v1051 = vsel %vm1050, %v1043, %v1047
    %v1052 = vand.u32 2147483647, %v1042
    %vm1053 = vcmp.eq.f32.partialorder %v1052, 8.507059e+37
    %v1054 = vand.u32 %v1042, 2147483648
    %v1055 = vor.u32 1.1754944e-38, %v1054
    %v1056 = vsel %vm1053, %v1055, %v1051
    %v1057 = vmul.f32 %v1032, %v1056
    %v1058 = vmin.f32 %v1057, 1.0
    %v1059 = vmax.f32 %v1058, -1.0
    %v1060 = vmul.f32 %v810, %v810
    %v1061 = vmin.f32 16.0, %v1060
    %v1062 = vmul.f32 %v1061, 2.1237322e-06
    %v1063 = vadd.f32 %v1062, 0.00028619796
    %v1064 = vmul.f32 %v1061, %v1063
    %v1065 = vadd.f32 %v1064, 0.0036580483
    %v1066 = vmul.f32 %v1061, %v1065
    %v1067 = vadd.f32 %v1066, 0.05243302
    %v1068 = vmul.f32 %v1061, %v1067
    %v1069 = vadd.f32 %v1068, 0.18741608
    %v1070 = vmul.f32 %v1061, %v1069
    %v1071 = vadd.f32 %v1070, 1.1283791
    %v1072 = vmul.f32 %v810, %v1071
    %v1073 = vmul.f32 %v1061, 3.8918573e-05
    %v1074 = vadd.f32 %v1073, 0.001143296
    %v1075 = vmul.f32 %v1061, %v1074
    %v1076 = vadd.f32 %v1075, 0.014752088
    %v1077 = vmul.f32 %v1061, %v1076
    %v1078 = vadd.f32 %v1077, 0.112945676
    %v1079 = vmul.f32 %v1061, %v1078
    %v1080 = vadd.f32 %v1079, 0.4994258
    %v1081 = vmul.f32 %v1061, %v1080
    %v1082 = vadd.f32 %v1081, 1.0
    %v1083 = vrcp.pop %v1082
    %v1084 = vmul.f32 %v1082, %v1083
    %v1085 = vsub.f32 1.0, %v1084
    %v1086 = vmul.f32 %v1083, %v1085
    %v1087 = vadd.f32 %v1083, %v1086
    %vm1088 = vweird.f32 %v1082
    %vm1089 = vweird.f32 %v1083
    %vm1090 = vmor %vm1088, %vm1089
    %v1091 = vsel %vm1090, %v1083, %v1087
    %v1092 = vand.u32 2147483647, %v1082
    %vm1093 = vcmp.eq.f32.partialorder %v1092, 8.507059e+37
    %v1094 = vand.u32 %v1082, 2147483648
    %v1095 = vor.u32 1.1754944e-38, %v1094
    %v1096 = vsel %vm1093, %v1095, %v1091
    %v1097 = vmul.f32 %v1072, %v1096
    %v1098 = vmin.f32 %v1097, 1.0
    %v1099 = vmax.f32 %v1098, -1.0
    %v1100 = vmul.f32 %v811, %v811
    %v1101 = vmin.f32 16.0, %v1100
    %v1102 = vmul.f32 %v1101, 2.1237322e-06
    %v1103 = vadd.f32 %v1102, 0.00028619796
    %v1104 = vmul.f32 %v1101, %v1103
    %v1105 = vadd.f32 %v1104, 0.0036580483
    %v1106 = vmul.f32 %v1101, %v1105
    %v1107 = vadd.f32 %v1106, 0.05243302
    %v1108 = vmul.f32 %v1101, %v1107
    %v1109 = vadd.f32 %v1108, 0.18741608
    %v1110 = vmul.f32 %v1101, %v1109
    %v1111 = vadd.f32 %v1110, 1.1283791
    %v1112 = vmul.f32 %v811, %v1111
    %v1113 = vmul.f32 %v1101, 3.8918573e-05
    %v1114 = vadd.f32 %v1113, 0.001143296
    %v1115 = vmul.f32 %v1101, %v1114
    %v1116 = vadd.f32 %v1115, 0.014752088
    %v1117 = vmul.f32 %v1101, %v1116
    %v1118 = vadd.f32 %v1117, 0.112945676
    %v1119 = vmul.f32 %v1101, %v1118
    %v1120 = vadd.f32 %v1119, 0.4994258
    %v1121 = vmul.f32 %v1101, %v1120
    %v1122 = vadd.f32 %v1121, 1.0
    %v1123 = vrcp.pop %v1122
    %v1124 = vmul.f32 %v1122, %v1123
    %v1125 = vsub.f32 1.0, %v1124
    %v1126 = vmul.f32 %v1123, %v1125
    %v1127 = vadd.f32 %v1123, %v1126
    %vm1128 = vweird.f32 %v1122
    %vm1129 = vweird.f32 %v1123
    %vm1130 = vmor %vm1128, %vm1129
    %v1131 = vsel %vm1130, %v1123, %v1127
    %v1132 = vand.u32 2147483647, %v1122
    %vm1133 = vcmp.eq.f32.partialorder %v1132, 8.507059e+37
    %v1134 = vand.u32 %v1122, 2147483648
    %v1135 = vor.u32 1.1754944e-38, %v1134
    %v1136 = vsel %vm1133, %v1135, %v1131
    %v1137 = vmul.f32 %v1112, %v1136
    %v1138 = vmin.f32 %v1137, 1.0
    %v1139 = vmax.f32 %v1138, -1.0
    %v1140 = vmul.f32 %v812, %v812
    %v1141 = vmin.f32 16.0, %v1140
    %v1142 = vmul.f32 %v1141, 2.1237322e-06
    %v1143 = vadd.f32 %v1142, 0.00028619796
    %v1144 = vmul.f32 %v1141, %v1143
    %v1145 = vadd.f32 %v1144, 0.0036580483
    %v1146 = vmul.f32 %v1141, %v1145
    %v1147 = vadd.f32 %v1146, 0.05243302
    %v1148 = vmul.f32 %v1141, %v1147
    %v1149 = vadd.f32 %v1148, 0.18741608
    %v1150 = vmul.f32 %v1141, %v1149
    %v1151 = vadd.f32 %v1150, 1.1283791
    %v1152 = vmul.f32 %v812, %v1151
    %v1153 = vmul.f32 %v1141, 3.8918573e-05
    %v1154 = vadd.f32 %v1153, 0.001143296
    %v1155 = vmul.f32 %v1141, %v1154
    %v1156 = vadd.f32 %v1155, 0.014752088
    %v1157 = vmul.f32 %v1141, %v1156
    %v1158 = vadd.f32 %v1157, 0.112945676
    %v1159 = vmul.f32 %v1141, %v1158
    %v1160 = vadd.f32 %v1159, 0.4994258
    %v1161 = vmul.f32 %v1141, %v1160
    %v1162 = vadd.f32 %v1161, 1.0
    %v1163 = vrcp.pop %v1162
    %v1164 = vmul.f32 %v1162, %v1163
    %v1165 = vsub.f32 1.0, %v1164
    %v1166 = vmul.f32 %v1163, %v1165
    %v1167 = vadd.f32 %v1163, %v1166
    %vm1168 = vweird.f32 %v1162
    %vm1169 = vweird.f32 %v1163
    %vm1170 = vmor %vm1168, %vm1169
    %v1171 = vsel %vm1170, %v1163, %v1167
    %v1172 = vand.u32 2147483647, %v1162
    %vm1173 = vcmp.eq.f32.partialorder %v1172, 8.507059e+37
    %v1174 = vand.u32 %v1162, 2147483648
    %v1175 = vor.u32 1.1754944e-38, %v1174
    %v1176 = vsel %vm1173, %v1175, %v1171
    %v1177 = vmul.f32 %v1152, %v1176
    %v1178 = vmin.f32 %v1177, 1.0
    %v1179 = vmax.f32 %v1178, -1.0
    %v1180 = vmul.f32 %v813, %v813
    %v1181 = vmin.f32 16.0, %v1180
    %v1182 = vmul.f32 %v1181, 2.1237322e-06
    %v1183 = vadd.f32 %v1182, 0.00028619796
    %v1184 = vmul.f32 %v1181, %v1183
    %v1185 = vadd.f32 %v1184, 0.0036580483
    %v1186 = vmul.f32 %v1181, %v1185
    %v1187 = vadd.f32 %v1186, 0.05243302
    %v1188 = vmul.f32 %v1181, %v1187
    %v1189 = vadd.f32 %v1188, 0.18741608
    %v1190 = vmul.f32 %v1181, %v1189
    %v1191 = vadd.f32 %v1190, 1.1283791
    %v1192 = vmul.f32 %v813, %v1191
    %v1193 = vmul.f32 %v1181, 3.8918573e-05
    %v1194 = vadd.f32 %v1193, 0.001143296
    %v1195 = vmul.f32 %v1181, %v1194
    %v1196 = vadd.f32 %v1195, 0.014752088
    %v1197 = vmul.f32 %v1181, %v1196
    %v1198 = vadd.f32 %v1197, 0.112945676
    %v1199 = vmul.f32 %v1181, %v1198
    %v1200 = vadd.f32 %v1199, 0.4994258
    %v1201 = vmul.f32 %v1181, %v1200
    %v1202 = vadd.f32 %v1201, 1.0
    %v1203 = vrcp.pop %v1202
    %v1204 = vmul.f32 %v1202, %v1203
    %v1205 = vsub.f32 1.0, %v1204
    %v1206 = vmul.f32 %v1203, %v1205
    %v1207 = vadd.f32 %v1203, %v1206
    %vm1208 = vweird.f32 %v1202
    %vm1209 = vweird.f32 %v1203
    %vm1210 = vmor %vm1208, %vm1209
    %v1211 = vsel %vm1210, %v1203, %v1207
    %v1212 = vand.u32 2147483647, %v1202
    %vm1213 = vcmp.eq.f32.partialorder %v1212, 8.507059e+37
    %v1214 = vand.u32 %v1202, 2147483648
    %v1215 = vor.u32 1.1754944e-38, %v1214
    %v1216 = vsel %vm1213, %v1215, %v1211
    %v1217 = vmul.f32 %v1192, %v1216
    %v1218 = vmin.f32 %v1217, 1.0
    %v1219 = vmax.f32 %v1218, -1.0
    %v1220 = vmul.f32 %v814, %v814
    %v1221 = vmin.f32 16.0, %v1220
    %v1222 = vmul.f32 %v1221, 2.1237322e-06
    %v1223 = vadd.f32 %v1222, 0.00028619796
    %v1224 = vmul.f32 %v1221, %v1223
    %v1225 = vadd.f32 %v1224, 0.0036580483
    %v1226 = vmul.f32 %v1221, %v1225
    %v1227 = vadd.f32 %v1226, 0.05243302
    %v1228 = vmul.f32 %v1221, %v1227
    %v1229 = vadd.f32 %v1228, 0.18741608
    %v1230 = vmul.f32 %v1221, %v1229
    %v1231 = vadd.f32 %v1230, 1.1283791
    %v1232 = vmul.f32 %v814, %v1231
    %v1233 = vmul.f32 %v1221, 3.8918573e-05
    %v1234 = vadd.f32 %v1233, 0.001143296
    %v1235 = vmul.f32 %v1221, %v1234
    %v1236 = vadd.f32 %v1235, 0.014752088
    %v1237 = vmul.f32 %v1221, %v1236
    %v1238 = vadd.f32 %v1237, 0.112945676
    %v1239 = vmul.f32 %v1221, %v1238
    %v1240 = vadd.f32 %v1239, 0.4994258
    %v1241 = vmul.f32 %v1221, %v1240
    %v1242 = vadd.f32 %v1241, 1.0
    %v1243 = vrcp.pop %v1242
    %v1244 = vmul.f32 %v1242, %v1243
    %v1245 = vsub.f32 1.0, %v1244
    %v1246 = vmul.f32 %v1243, %v1245
    %v1247 = vadd.f32 %v1243, %v1246
    %vm1248 = vweird.f32 %v1242
    %vm1249 = vweird.f32 %v1243
    %vm1250 = vmor %vm1248, %vm1249
    %v1251 = vsel %vm1250, %v1243, %v1247
    %v1252 = vand.u32 2147483647, %v1242
    %vm1253 = vcmp.eq.f32.partialorder %v1252, 8.507059e+37
    %v1254 = vand.u32 %v1242, 2147483648
    %v1255 = vor.u32 1.1754944e-38, %v1254
    %v1256 = vsel %vm1253, %v1255, %v1251
    %v1257 = vmul.f32 %v1232, %v1256
    %v1258 = vmin.f32 %v1257, 1.0
    %v1259 = vmax.f32 %v1258, -1.0
    %v1260 = vmul.f32 %v815, %v815
    %v1261 = vmin.f32 16.0, %v1260
    %v1262 = vmul.f32 %v1261, 2.1237322e-06
    %v1263 = vadd.f32 %v1262, 0.00028619796
    %v1264 = vmul.f32 %v1261, %v1263
    %v1265 = vadd.f32 %v1264, 0.0036580483
    %v1266 = vmul.f32 %v1261, %v1265
    %v1267 = vadd.f32 %v1266, 0.05243302
    %v1268 = vmul.f32 %v1261, %v1267
    %v1269 = vadd.f32 %v1268, 0.18741608
    %v1270 = vmul.f32 %v1261, %v1269
    %v1271 = vadd.f32 %v1270, 1.1283791
    %v1272 = vmul.f32 %v815, %v1271
    %v1273 = vmul.f32 %v1261, 3.8918573e-05
    %v1274 = vadd.f32 %v1273, 0.001143296
    %v1275 = vmul.f32 %v1261, %v1274
    %v1276 = vadd.f32 %v1275, 0.014752088
    %v1277 = vmul.f32 %v1261, %v1276
    %v1278 = vadd.f32 %v1277, 0.112945676
    %v1279 = vmul.f32 %v1261, %v1278
    %v1280 = vadd.f32 %v1279, 0.4994258
    %v1281 = vmul.f32 %v1261, %v1280
    %v1282 = vadd.f32 %v1281, 1.0
    %v1283 = vrcp.pop %v1282
    %v1284 = vmul.f32 %v1282, %v1283
    %v1285 = vsub.f32 1.0, %v1284
    %v1286 = vmul.f32 %v1283, %v1285
    %v1287 = vadd.f32 %v1283, %v1286
    %vm1288 = vweird.f32 %v1282
    %vm1289 = vweird.f32 %v1283
    %vm1290 = vmor %vm1288, %vm1289
    %v1291 = vsel %vm1290, %v1283, %v1287
    %v1292 = vand.u32 2147483647, %v1282
    %vm1293 = vcmp.eq.f32.partialorder %v1292, 8.507059e+37
    %v1294 = vand.u32 %v1282, 2147483648
    %v1295 = vor.u32 1.1754944e-38, %v1294
    %v1296 = vsel %vm1293, %v1295, %v1291
    %v1297 = vmul.f32 %v1272, %v1296
    %v1298 = vmin.f32 %v1297, 1.0
    %v1299 = vmax.f32 %v1298, -1.0
    %v1300 = vmul.f32 %v816, %v816
    %v1301 = vmin.f32 16.0, %v1300
    %v1302 = vmul.f32 %v1301, 2.1237322e-06
    %v1303 = vadd.f32 %v1302, 0.00028619796
    %v1304 = vmul.f32 %v1301, %v1303
    %v1305 = vadd.f32 %v1304, 0.0036580483
    %v1306 = vmul.f32 %v1301, %v1305
    %v1307 = vadd.f32 %v1306, 0.05243302
    %v1308 = vmul.f32 %v1301, %v1307
    %v1309 = vadd.f32 %v1308, 0.18741608
    %v1310 = vmul.f32 %v1301, %v1309
    %v1311 = vadd.f32 %v1310, 1.1283791
    %v1312 = vmul.f32 %v816, %v1311
    %v1313 = vmul.f32 %v1301, 3.8918573e-05
    %v1314 = vadd.f32 %v1313, 0.001143296
    %v1315 = vmul.f32 %v1301, %v1314
    %v1316 = vadd.f32 %v1315, 0.014752088
    %v1317 = vmul.f32 %v1301, %v1316
    %v1318 = vadd.f32 %v1317, 0.112945676
    %v1319 = vmul.f32 %v1301, %v1318
    %v1320 = vadd.f32 %v1319, 0.4994258
    %v1321 = vmul.f32 %v1301, %v1320
    %v1322 = vadd.f32 %v1321, 1.0
    %v1323 = vrcp.pop %v1322
    %v1324 = vmul.f32 %v1322, %v1323
    %v1325 = vsub.f32 1.0, %v1324
    %v1326 = vmul.f32 %v1323, %v1325
    %v1327 = vadd.f32 %v1323, %v1326
    %vm1328 = vweird.f32 %v1322
    %vm1329 = vweird.f32 %v1323
    %vm1330 = vmor %vm1328, %vm1329
    %v1331 = vsel %vm1330, %v1323, %v1327
    %v1332 = vand.u32 2147483647, %v1322
    %vm1333 = vcmp.eq.f32.partialorder %v1332, 8.507059e+37
    %v1334 = vand.u32 %v1322, 2147483648
    %v1335 = vor.u32 1.1754944e-38, %v1334
    %v1336 = vsel %vm1333, %v1335, %v1331
    %v1337 = vmul.f32 %v1312, %v1336
    %v1338 = vmin.f32 %v1337, 1.0
    %v1339 = vmax.f32 %v1338, -1.0
    %v1340 = vmul.f32 %v817, %v817
    %v1341 = vmin.f32 16.0, %v1340
    %v1342 = vmul.f32 %v1341, 2.1237322e-06
    %v1343 = vadd.f32 %v1342, 0.00028619796
    %v1344 = vmul.f32 %v1341, %v1343
    %v1345 = vadd.f32 %v1344, 0.0036580483
    %v1346 = vmul.f32 %v1341, %v1345
    %v1347 = vadd.f32 %v1346, 0.05243302
    %v1348 = vmul.f32 %v1341, %v1347
    %v1349 = vadd.f32 %v1348, 0.18741608
    %v1350 = vmul.f32 %v1341, %v1349
    %v1351 = vadd.f32 %v1350, 1.1283791
    %v1352 = vmul.f32 %v817, %v1351
    %v1353 = vmul.f32 %v1341, 3.8918573e-05
    %v1354 = vadd.f32 %v1353, 0.001143296
    %v1355 = vmul.f32 %v1341, %v1354
    %v1356 = vadd.f32 %v1355, 0.014752088
    %v1357 = vmul.f32 %v1341, %v1356
    %v1358 = vadd.f32 %v1357, 0.112945676
    %v1359 = vmul.f32 %v1341, %v1358
    %v1360 = vadd.f32 %v1359, 0.4994258
    %v1361 = vmul.f32 %v1341, %v1360
    %v1362 = vadd.f32 %v1361, 1.0
    %v1363 = vrcp.pop %v1362
    %v1364 = vmul.f32 %v1362, %v1363
    %v1365 = vsub.f32 1.0, %v1364
    %v1366 = vmul.f32 %v1363, %v1365
    %v1367 = vadd.f32 %v1363, %v1366
    %vm1368 = vweird.f32 %v1362
    %vm1369 = vweird.f32 %v1363
    %vm1370 = vmor %vm1368, %vm1369
    %v1371 = vsel %vm1370, %v1363, %v1367
    %v1372 = vand.u32 2147483647, %v1362
    %vm1373 = vcmp.eq.f32.partialorder %v1372, 8.507059e+37
    %v1374 = vand.u32 %v1362, 2147483648
    %v1375 = vor.u32 1.1754944e-38, %v1374
    %v1376 = vsel %vm1373, %v1375, %v1371
    %v1377 = vmul.f32 %v1352, %v1376
    %v1378 = vmin.f32 %v1377, 1.0
    %v1379 = vmax.f32 %v1378, -1.0
    %v1380 = vmul.f32 %v818, %v818
    %v1381 = vmin.f32 16.0, %v1380
    %v1382 = vmul.f32 %v1381, 2.1237322e-06
    %v1383 = vadd.f32 %v1382, 0.00028619796
    %v1384 = vmul.f32 %v1381, %v1383
    %v1385 = vadd.f32 %v1384, 0.0036580483
    %v1386 = vmul.f32 %v1381, %v1385
    %v1387 = vadd.f32 %v1386, 0.05243302
    %v1388 = vmul.f32 %v1381, %v1387
    %v1389 = vadd.f32 %v1388, 0.18741608
    %v1390 = vmul.f32 %v1381, %v1389
    %v1391 = vadd.f32 %v1390, 1.1283791
    %v1392 = vmul.f32 %v818, %v1391
    %v1393 = vmul.f32 %v1381, 3.8918573e-05
    %v1394 = vadd.f32 %v1393, 0.001143296
    %v1395 = vmul.f32 %v1381, %v1394
    %v1396 = vadd.f32 %v1395, 0.014752088
    %v1397 = vmul.f32 %v1381, %v1396
    %v1398 = vadd.f32 %v1397, 0.112945676
    %v1399 = vmul.f32 %v1381, %v1398
    %v1400 = vadd.f32 %v1399, 0.4994258
    %v1401 = vmul.f32 %v1381, %v1400
    %v1402 = vadd.f32 %v1401, 1.0
    %v1403 = vrcp.pop %v1402
    %v1404 = vmul.f32 %v1402, %v1403
    %v1405 = vsub.f32 1.0, %v1404
    %v1406 = vmul.f32 %v1403, %v1405
    %v1407 = vadd.f32 %v1403, %v1406
    %vm1408 = vweird.f32 %v1402
    %vm1409 = vweird.f32 %v1403
    %vm1410 = vmor %vm1408, %vm1409
    %v1411 = vsel %vm1410, %v1403, %v1407
    %v1412 = vand.u32 2147483647, %v1402
    %vm1413 = vcmp.eq.f32.partialorder %v1412, 8.507059e+37
    %v1414 = vand.u32 %v1402, 2147483648
    %v1415 = vor.u32 1.1754944e-38, %v1414
    %v1416 = vsel %vm1413, %v1415, %v1411
    %v1417 = vmul.f32 %v1392, %v1416
    %v1418 = vmin.f32 %v1417, 1.0
    %v1419 = vmax.f32 %v1418, -1.0
    %v1420 = vmul.f32 %v819, %v819
    %v1421 = vmin.f32 16.0, %v1420
    %v1422 = vmul.f32 %v1421, 2.1237322e-06
    %v1423 = vadd.f32 %v1422, 0.00028619796
    %v1424 = vmul.f32 %v1421, %v1423
    %v1425 = vadd.f32 %v1424, 0.0036580483
    %v1426 = vmul.f32 %v1421, %v1425
    %v1427 = vadd.f32 %v1426, 0.05243302
    %v1428 = vmul.f32 %v1421, %v1427
    %v1429 = vadd.f32 %v1428, 0.18741608
    %v1430 = vmul.f32 %v1421, %v1429
    %v1431 = vadd.f32 %v1430, 1.1283791
    %v1432 = vmul.f32 %v819, %v1431
    %v1433 = vmul.f32 %v1421, 3.8918573e-05
    %v1434 = vadd.f32 %v1433, 0.001143296
    %v1435 = vmul.f32 %v1421, %v1434
    %v1436 = vadd.f32 %v1435, 0.014752088
    %v1437 = vmul.f32 %v1421, %v1436
    %v1438 = vadd.f32 %v1437, 0.112945676
    %v1439 = vmul.f32 %v1421, %v1438
    %v1440 = vadd.f32 %v1439, 0.4994258
    %v1441 = vmul.f32 %v1421, %v1440
    %v1442 = vadd.f32 %v1441, 1.0
    %v1443 = vrcp.pop %v1442
    %v1444 = vmul.f32 %v1442, %v1443
    %v1445 = vsub.f32 1.0, %v1444
    %v1446 = vmul.f32 %v1443, %v1445
    %v1447 = vadd.f32 %v1443, %v1446
    %vm1448 = vweird.f32 %v1442
    %vm1449 = vweird.f32 %v1443
    %vm1450 = vmor %vm1448, %vm1449
    %v1451 = vsel %vm1450, %v1443, %v1447
    %v1452 = vand.u32 2147483647, %v1442
    %vm1453 = vcmp.eq.f32.partialorder %v1452, 8.507059e+37
    %v1454 = vand.u32 %v1442, 2147483648
    %v1455 = vor.u32 1.1754944e-38, %v1454
    %v1456 = vsel %vm1453, %v1455, %v1451
    %v1457 = vmul.f32 %v1432, %v1456
    %v1458 = vmin.f32 %v1457, 1.0
    %v1459 = vmax.f32 %v1458, -1.0
    %v1460 = vadd.f32 %v859, 1.0
    %v1461 = vadd.f32 %v899, 1.0
    %v1462 = vadd.f32 %v939, 1.0
    %v1463 = vadd.f32 %v979, 1.0
    %v1464 = vadd.f32 %v1019, 1.0
    %v1465 = vadd.f32 %v1059, 1.0
    %v1466 = vadd.f32 %v1099, 1.0
    %v1467 = vadd.f32 %v1139, 1.0
    %v1468 = vadd.f32 %v1179, 1.0
    %v1469 = vadd.f32 %v1219, 1.0
    %v1470 = vadd.f32 %v1259, 1.0
    %v1471 = vadd.f32 %v1299, 1.0
    %v1472 = vadd.f32 %v1339, 1.0
    %v1473 = vadd.f32 %v1379, 1.0
    %v1474 = vadd.f32 %v1419, 1.0
    %v1475 = vadd.f32 %v1459, 1.0
    %v1476 = vmul.f32 %v788, %v1460
    %v1477 = vmul.f32 %v789, %v1461
    %v1478 = vmul.f32 %v790, %v1462
    %v1479 = vmul.f32 %v791, %v1463
    %v1480 = vmul.f32 %v792, %v1464
    %v1481 = vmul.f32 %v793, %v1465
    %v1482 = vmul.f32 %v794, %v1466
    %v1483 = vmul.f32 %v795, %v1467
    %v1484 = vmul.f32 %v796, %v1468
    %v1485 = vmul.f32 %v797, %v1469
    %v1486 = vmul.f32 %v798, %v1470
    %v1487 = vmul.f32 %v799, %v1471
    %v1488 = vmul.f32 %v800, %v1472
    %v1489 = vmul.f32 %v801, %v1473
    %v1490 = vmul.f32 %v802, %v1474
    %v1491 = vmul.f32 %v803, %v1475
    %v1492 = vpack.c.bf16 %v1476, %v1476
    %v1493 = vpack.c.bf16 %v1477, %v1477
    %v1494 = vpack.c.bf16 %v1478, %v1478
    %v1495 = vpack.c.bf16 %v1479, %v1479
    %v1496 = vpack.c.bf16 %v1480, %v1480
    %v1497 = vpack.c.bf16 %v1481, %v1481
    %v1498 = vpack.c.bf16 %v1482, %v1482
    %v1499 = vpack.c.bf16 %v1483, %v1483
    %v1500 = vpack.c.bf16 %v1484, %v1484
    %v1501 = vpack.c.bf16 %v1485, %v1485
    %v1502 = vpack.c.bf16 %v1486, %v1486
    %v1503 = vpack.c.bf16 %v1487, %v1487
    %v1504 = vpack.c.bf16 %v1488, %v1488
    %v1505 = vpack.c.bf16 %v1489, %v1489
    %v1506 = vpack.c.bf16 %v1490, %v1490
    %v1507 = vpack.c.bf16 %v1491, %v1491
    %v1508 = vld [vmem:[#allocation10] sm:$0xf]
    %v1509 = vld [vmem:[#allocation10 + $0x4] sm:$0xf]
    %v1510 = vld [vmem:[#allocation10 + $0x8] sm:$0xf]
    %v1511 = vld [vmem:[#allocation10 + $0xc] sm:$0xf]
    %v1512 = vld [vmem:[#allocation10 + $0x10] sm:$0xf]
    %v1513 = vld [vmem:[#allocation10 + $0x14] sm:$0xf]
    %v1514 = vld [vmem:[#allocation10 + $0x18] sm:$0xf]
    %v1515 = vld [vmem:[#allocation10 + $0x1c] sm:$0xf]
    %v1516 = vld [vmem:[#allocation10 + $0x20] sm:$0xf]
    %v1517 = vld [vmem:[#allocation10 + $0x24] sm:$0xf]
    %v1518 = vld [vmem:[#allocation10 + $0x28] sm:$0xf]
    %v1519 = vld [vmem:[#allocation10 + $0x2c] sm:$0xf]
    %v1520 = vld [vmem:[#allocation10 + $0x30] sm:$0xf]
    %v1521 = vld [vmem:[#allocation10 + $0x34] sm:$0xf]
    %v1522 = vld [vmem:[#allocation10 + $0x38] sm:$0xf]
    %v1523 = vld [vmem:[#allocation10 + $0x3c] sm:$0xf]
    %v1524 = vld [vmem:[#allocation10 + $0x40] sm:$0xf]
    %v1525 = vld [vmem:[#allocation10 + $0x44] sm:$0xf]
    %v1526 = vld [vmem:[#allocation10 + $0x48] sm:$0xf]
    %v1527 = vld [vmem:[#allocation10 + $0x4c] sm:$0xf]
    %v1528 = vld [vmem:[#allocation10 + $0x50] sm:$0xf]
    %v1529 = vld [vmem:[#allocation10 + $0x54] sm:$0xf]
    %v1530 = vld [vmem:[#allocation10 + $0x58] sm:$0xf]
    %v1531 = vld [vmem:[#allocation10 + $0x5c] sm:$0xf]
    %v1532 = vld [vmem:[#allocation10 + $0x60] sm:$0xf]
    %v1533 = vld [vmem:[#allocation10 + $0x64] sm:$0xf]
    %v1534 = vld [vmem:[#allocation10 + $0x68] sm:$0xf]
    %v1535 = vld [vmem:[#allocation10 + $0x6c] sm:$0xf]
    %v1536 = vld [vmem:[#allocation10 + $0x70] sm:$0xf]
    %v1537 = vld [vmem:[#allocation10 + $0x74] sm:$0xf]
    %v1538 = vld [vmem:[#allocation10 + $0x78] sm:$0xf]
    %v1539 = vld [vmem:[#allocation10 + $0x7c] sm:$0xf]
    %v1540 = vld [vmem:[#allocation10 + $0x80] sm:$0xf]
    %v1541 = vld [vmem:[#allocation10 + $0x84] sm:$0xf]
    %v1542 = vld [vmem:[#allocation10 + $0x88] sm:$0xf]
    %v1543 = vld [vmem:[#allocation10 + $0x8c] sm:$0xf]
    %v1544 = vld [vmem:[#allocation10 + $0x90] sm:$0xf]
    %v1545 = vld [vmem:[#allocation10 + $0x94] sm:$0xf]
    %v1546 = vld [vmem:[#allocation10 + $0x98] sm:$0xf]
    %v1547 = vld [vmem:[#allocation10 + $0x9c] sm:$0xf]
    %v1548 = vld [vmem:[#allocation10 + $0xa0] sm:$0xf]
    %v1549 = vld [vmem:[#allocation10 + $0xa4] sm:$0xf]
    %v1550 = vld [vmem:[#allocation10 + $0xa8] sm:$0xf]
    %v1551 = vld [vmem:[#allocation10 + $0xac] sm:$0xf]
    %v1552 = vld [vmem:[#allocation10 + $0xb0] sm:$0xf]
    %v1553 = vld [vmem:[#allocation10 + $0xb4] sm:$0xf]
    %v1554 = vld [vmem:[#allocation10 + $0xb8] sm:$0xf]
    %v1555 = vld [vmem:[#allocation10 + $0xbc] sm:$0xf]
    %v1556 = vld [vmem:[#allocation10 + $0xc0] sm:$0xf]
    %v1557 = vld [vmem:[#allocation10 + $0xc4] sm:$0xf]
    %v1558 = vld [vmem:[#allocation10 + $0xc8] sm:$0xf]
    %v1559 = vld [vmem:[#allocation10 + $0xcc] sm:$0xf]
    %v1560 = vld [vmem:[#allocation10 + $0xd0] sm:$0xf]
    %v1561 = vld [vmem:[#allocation10 + $0xd4] sm:$0xf]
    %v1562 = vld [vmem:[#allocation10 + $0xd8] sm:$0xf]
    %v1563 = vld [vmem:[#allocation10 + $0xdc] sm:$0xf]
    %v1564 = vld [vmem:[#allocation10 + $0xe0] sm:$0xf]
    %v1565 = vld [vmem:[#allocation10 + $0xe4] sm:$0xf]
    %v1566 = vld [vmem:[#allocation10 + $0xe8] sm:$0xf]
    %v1567 = vld [vmem:[#allocation10 + $0xec] sm:$0xf]
    %v1568 = vld [vmem:[#allocation10 + $0xf0] sm:$0xf]
    %v1569 = vld [vmem:[#allocation10 + $0xf4] sm:$0xf]
    %v1570 = vld [vmem:[#allocation10 + $0xf8] sm:$0xf]
    %v1571 = vld [vmem:[#allocation10 + $0xfc] sm:$0xf]
    %v1572 = vld [vmem:[#allocation10 + $0x100] sm:$0xf]
    %v1573 = vld [vmem:[#allocation10 + $0x104] sm:$0xf]
    %v1574 = vld [vmem:[#allocation10 + $0x108] sm:$0xf]
    %v1575 = vld [vmem:[#allocation10 + $0x10c] sm:$0xf]
    %v1576 = vld [vmem:[#allocation10 + $0x110] sm:$0xf]
    %v1577 = vld [vmem:[#allocation10 + $0x114] sm:$0xf]
    %v1578 = vld [vmem:[#allocation10 + $0x118] sm:$0xf]
    %v1579 = vld [vmem:[#allocation10 + $0x11c] sm:$0xf]
    %v1580 = vld [vmem:[#allocation10 + $0x120] sm:$0xf]
    %v1581 = vld [vmem:[#allocation10 + $0x124] sm:$0xf]
    %v1582 = vld [vmem:[#allocation10 + $0x128] sm:$0xf]
    %v1583 = vld [vmem:[#allocation10 + $0x12c] sm:$0xf]
    %v1584 = vld [vmem:[#allocation10 + $0x130] sm:$0xf]
    %v1585 = vld [vmem:[#allocation10 + $0x134] sm:$0xf]
    %v1586 = vld [vmem:[#allocation10 + $0x138] sm:$0xf]
    %v1587 = vld [vmem:[#allocation10 + $0x13c] sm:$0xf]
    %v1588 = vld [vmem:[#allocation10 + $0x140] sm:$0xf]
    %v1589 = vld [vmem:[#allocation10 + $0x144] sm:$0xf]
    %v1590 = vld [vmem:[#allocation10 + $0x148] sm:$0xf]
    %v1591 = vld [vmem:[#allocation10 + $0x14c] sm:$0xf]
    %v1592 = vld [vmem:[#allocation10 + $0x150] sm:$0xf]
    %v1593 = vld [vmem:[#allocation10 + $0x154] sm:$0xf]
    %v1594 = vld [vmem:[#allocation10 + $0x158] sm:$0xf]
    %v1595 = vld [vmem:[#allocation10 + $0x15c] sm:$0xf]
    %v1596 = vld [vmem:[#allocation10 + $0x160] sm:$0xf]
    %v1597 = vld [vmem:[#allocation10 + $0x164] sm:$0xf]
    %v1598 = vld [vmem:[#allocation10 + $0x168] sm:$0xf]
    %v1599 = vld [vmem:[#allocation10 + $0x16c] sm:$0xf]
    %v1600 = vld [vmem:[#allocation10 + $0x170] sm:$0xf]
    %v1601 = vld [vmem:[#allocation10 + $0x174] sm:$0xf]
    %v1602 = vld [vmem:[#allocation10 + $0x178] sm:$0xf]
    %v1603 = vld [vmem:[#allocation10 + $0x17c] sm:$0xf]
    %v1604 = vld [vmem:[#allocation10 + $0x180] sm:$0xf]
    %v1605 = vld [vmem:[#allocation10 + $0x184] sm:$0xf]
    %v1606 = vld [vmem:[#allocation10 + $0x188] sm:$0xf]
    %v1607 = vld [vmem:[#allocation10 + $0x18c] sm:$0xf]
    %v1608 = vld [vmem:[#allocation10 + $0x190] sm:$0xf]
    %v1609 = vld [vmem:[#allocation10 + $0x194] sm:$0xf]
    %v1610 = vld [vmem:[#allocation10 + $0x198] sm:$0xf]
    %v1611 = vld [vmem:[#allocation10 + $0x19c] sm:$0xf]
    %v1612 = vld [vmem:[#allocation10 + $0x1a0] sm:$0xf]
    %v1613 = vld [vmem:[#allocation10 + $0x1a4] sm:$0xf]
    %v1614 = vld [vmem:[#allocation10 + $0x1a8] sm:$0xf]
    %v1615 = vld [vmem:[#allocation10 + $0x1ac] sm:$0xf]
    %v1616 = vld [vmem:[#allocation10 + $0x1b0] sm:$0xf]
    %v1617 = vld [vmem:[#allocation10 + $0x1b4] sm:$0xf]
    %v1618 = vld [vmem:[#allocation10 + $0x1b8] sm:$0xf]
    %v1619 = vld [vmem:[#allocation10 + $0x1bc] sm:$0xf]
    %v1620 = vld [vmem:[#allocation10 + $0x1c0] sm:$0xf]
    %v1621 = vld [vmem:[#allocation10 + $0x1c4] sm:$0xf]
    %v1622 = vld [vmem:[#allocation10 + $0x1c8] sm:$0xf]
    %v1623 = vld [vmem:[#allocation10 + $0x1cc] sm:$0xf]
    %v1624 = vld [vmem:[#allocation10 + $0x1d0] sm:$0xf]
    %v1625 = vld [vmem:[#allocation10 + $0x1d4] sm:$0xf]
    %v1626 = vld [vmem:[#allocation10 + $0x1d8] sm:$0xf]
    %v1627 = vld [vmem:[#allocation10 + $0x1dc] sm:$0xf]
    %v1628 = vld [vmem:[#allocation10 + $0x1e0] sm:$0xf]
    %v1629 = vld [vmem:[#allocation10 + $0x1e4] sm:$0xf]
    %v1630 = vld [vmem:[#allocation10 + $0x1e8] sm:$0xf]
    %v1631 = vld [vmem:[#allocation10 + $0x1ec] sm:$0xf]
    %v1632 = vld [vmem:[#allocation10 + $0x1f0] sm:$0xf]
    %v1633 = vld [vmem:[#allocation10 + $0x1f4] sm:$0xf]
    %v1634 = vld [vmem:[#allocation10 + $0x1f8] sm:$0xf]
    %v1635 = vld [vmem:[#allocation10 + $0x1fc] sm:$0xf]
    %v1636 = vld [vmem:[#allocation10 + $0x200] sm:$0xf]
    %v1637 = vld [vmem:[#allocation10 + $0x204] sm:$0xf]
    %v1638 = vld [vmem:[#allocation10 + $0x208] sm:$0xf]
    %v1639 = vld [vmem:[#allocation10 + $0x20c] sm:$0xf]
    %v1640 = vld [vmem:[#allocation10 + $0x210] sm:$0xf]
    %v1641 = vld [vmem:[#allocation10 + $0x214] sm:$0xf]
    %v1642 = vld [vmem:[#allocation10 + $0x218] sm:$0xf]
    %v1643 = vld [vmem:[#allocation10 + $0x21c] sm:$0xf]
    %v1644 = vld [vmem:[#allocation10 + $0x220] sm:$0xf]
    %v1645 = vld [vmem:[#allocation10 + $0x224] sm:$0xf]
    %v1646 = vld [vmem:[#allocation10 + $0x228] sm:$0xf]
    %v1647 = vld [vmem:[#allocation10 + $0x22c] sm:$0xf]
    %v1648 = vld [vmem:[#allocation10 + $0x230] sm:$0xf]
    %v1649 = vld [vmem:[#allocation10 + $0x234] sm:$0xf]
    %v1650 = vld [vmem:[#allocation10 + $0x238] sm:$0xf]
    %v1651 = vld [vmem:[#allocation10 + $0x23c] sm:$0xf]
    %v1652 = vld [vmem:[#allocation10 + $0x240] sm:$0xf]
    %v1653 = vld [vmem:[#allocation10 + $0x244] sm:$0xf]
    %v1654 = vld [vmem:[#allocation10 + $0x248] sm:$0xf]
    %v1655 = vld [vmem:[#allocation10 + $0x24c] sm:$0xf]
    %v1656 = vld [vmem:[#allocation10 + $0x250] sm:$0xf]
    %v1657 = vld [vmem:[#allocation10 + $0x254] sm:$0xf]
    %v1658 = vld [vmem:[#allocation10 + $0x258] sm:$0xf]
    %v1659 = vld [vmem:[#allocation10 + $0x25c] sm:$0xf]
    %v1660 = vld [vmem:[#allocation10 + $0x260] sm:$0xf]
    %v1661 = vld [vmem:[#allocation10 + $0x264] sm:$0xf]
    %v1662 = vld [vmem:[#allocation10 + $0x268] sm:$0xf]
    %v1663 = vld [vmem:[#allocation10 + $0x26c] sm:$0xf]
    %v1664 = vld [vmem:[#allocation10 + $0x270] sm:$0xf]
    %v1665 = vld [vmem:[#allocation10 + $0x274] sm:$0xf]
    %v1666 = vld [vmem:[#allocation10 + $0x278] sm:$0xf]
    %v1667 = vld [vmem:[#allocation10 + $0x27c] sm:$0xf]
    %v1668 = vld [vmem:[#allocation10 + $0x280] sm:$0xf]
    %v1669 = vld [vmem:[#allocation10 + $0x284] sm:$0xf]
    %v1670 = vld [vmem:[#allocation10 + $0x288] sm:$0xf]
    %v1671 = vld [vmem:[#allocation10 + $0x28c] sm:$0xf]
    %v1672 = vld [vmem:[#allocation10 + $0x290] sm:$0xf]
    %v1673 = vld [vmem:[#allocation10 + $0x294] sm:$0xf]
    %v1674 = vld [vmem:[#allocation10 + $0x298] sm:$0xf]
    %v1675 = vld [vmem:[#allocation10 + $0x29c] sm:$0xf]
    %v1676 = vld [vmem:[#allocation10 + $0x2a0] sm:$0xf]
    %v1677 = vld [vmem:[#allocation10 + $0x2a4] sm:$0xf]
    %v1678 = vld [vmem:[#allocation10 + $0x2a8] sm:$0xf]
    %v1679 = vld [vmem:[#allocation10 + $0x2ac] sm:$0xf]
    %v1680 = vld [vmem:[#allocation10 + $0x2b0] sm:$0xf]
    %v1681 = vld [vmem:[#allocation10 + $0x2b4] sm:$0xf]
    %v1682 = vld [vmem:[#allocation10 + $0x2b8] sm:$0xf]
    %v1683 = vld [vmem:[#allocation10 + $0x2bc] sm:$0xf]
    %v1684 = vld [vmem:[#allocation10 + $0x2c0] sm:$0xf]
    %v1685 = vld [vmem:[#allocation10 + $0x2c4] sm:$0xf]
    %v1686 = vld [vmem:[#allocation10 + $0x2c8] sm:$0xf]
    %v1687 = vld [vmem:[#allocation10 + $0x2cc] sm:$0xf]
    %v1688 = vld [vmem:[#allocation10 + $0x2d0] sm:$0xf]
    %v1689 = vld [vmem:[#allocation10 + $0x2d4] sm:$0xf]
    %v1690 = vld [vmem:[#allocation10 + $0x2d8] sm:$0xf]
    %v1691 = vld [vmem:[#allocation10 + $0x2dc] sm:$0xf]
    %v1692 = vld [vmem:[#allocation10 + $0x2e0] sm:$0xf]
    %v1693 = vld [vmem:[#allocation10 + $0x2e4] sm:$0xf]
    %v1694 = vld [vmem:[#allocation10 + $0x2e8] sm:$0xf]
    %v1695 = vld [vmem:[#allocation10 + $0x2ec] sm:$0xf]
    %v1696 = vld [vmem:[#allocation10 + $0x2f0] sm:$0xf]
    %v1697 = vld [vmem:[#allocation10 + $0x2f4] sm:$0xf]
    %v1698 = vld [vmem:[#allocation10 + $0x2f8] sm:$0xf]
    %v1699 = vld [vmem:[#allocation10 + $0x2fc] sm:$0xf]
    %v1700 = vld [vmem:[#allocation10 + $0x300] sm:$0xf]
    %v1701 = vld [vmem:[#allocation10 + $0x304] sm:$0xf]
    %v1702 = vld [vmem:[#allocation10 + $0x308] sm:$0xf]
    %v1703 = vld [vmem:[#allocation10 + $0x30c] sm:$0xf]
    %v1704 = vld [vmem:[#allocation10 + $0x310] sm:$0xf]
    %v1705 = vld [vmem:[#allocation10 + $0x314] sm:$0xf]
    %v1706 = vld [vmem:[#allocation10 + $0x318] sm:$0xf]
    %v1707 = vld [vmem:[#allocation10 + $0x31c] sm:$0xf]
    %v1708 = vld [vmem:[#allocation10 + $0x320] sm:$0xf]
    %v1709 = vld [vmem:[#allocation10 + $0x324] sm:$0xf]
    %v1710 = vld [vmem:[#allocation10 + $0x328] sm:$0xf]
    %v1711 = vld [vmem:[#allocation10 + $0x32c] sm:$0xf]
    %v1712 = vld [vmem:[#allocation10 + $0x330] sm:$0xf]
    %v1713 = vld [vmem:[#allocation10 + $0x334] sm:$0xf]
    %v1714 = vld [vmem:[#allocation10 + $0x338] sm:$0xf]
    %v1715 = vld [vmem:[#allocation10 + $0x33c] sm:$0xf]
    %v1716 = vld [vmem:[#allocation10 + $0x340] sm:$0xf]
    %v1717 = vld [vmem:[#allocation10 + $0x344] sm:$0xf]
    %v1718 = vld [vmem:[#allocation10 + $0x348] sm:$0xf]
    %v1719 = vld [vmem:[#allocation10 + $0x34c] sm:$0xf]
    %v1720 = vld [vmem:[#allocation10 + $0x350] sm:$0xf]
    %v1721 = vld [vmem:[#allocation10 + $0x354] sm:$0xf]
    %v1722 = vld [vmem:[#allocation10 + $0x358] sm:$0xf]
    %v1723 = vld [vmem:[#allocation10 + $0x35c] sm:$0xf]
    %v1724 = vld [vmem:[#allocation10 + $0x360] sm:$0xf]
    %v1725 = vld [vmem:[#allocation10 + $0x364] sm:$0xf]
    %v1726 = vld [vmem:[#allocation10 + $0x368] sm:$0xf]
    %v1727 = vld [vmem:[#allocation10 + $0x36c] sm:$0xf]
    %v1728 = vld [vmem:[#allocation10 + $0x370] sm:$0xf]
    %v1729 = vld [vmem:[#allocation10 + $0x374] sm:$0xf]
    %v1730 = vld [vmem:[#allocation10 + $0x378] sm:$0xf]
    %v1731 = vld [vmem:[#allocation10 + $0x37c] sm:$0xf]
    %v1732 = vld [vmem:[#allocation10 + $0x380] sm:$0xf]
    %v1733 = vld [vmem:[#allocation10 + $0x384] sm:$0xf]
    %v1734 = vld [vmem:[#allocation10 + $0x388] sm:$0xf]
    %v1735 = vld [vmem:[#allocation10 + $0x38c] sm:$0xf]
    %v1736 = vld [vmem:[#allocation10 + $0x390] sm:$0xf]
    %v1737 = vld [vmem:[#allocation10 + $0x394] sm:$0xf]
    %v1738 = vld [vmem:[#allocation10 + $0x398] sm:$0xf]
    %v1739 = vld [vmem:[#allocation10 + $0x39c] sm:$0xf]
    %v1740 = vld [vmem:[#allocation10 + $0x3a0] sm:$0xf]
    %v1741 = vld [vmem:[#allocation10 + $0x3a4] sm:$0xf]
    %v1742 = vld [vmem:[#allocation10 + $0x3a8] sm:$0xf]
    %v1743 = vld [vmem:[#allocation10 + $0x3ac] sm:$0xf]
    %v1744 = vld [vmem:[#allocation10 + $0x3b0] sm:$0xf]
    %v1745 = vld [vmem:[#allocation10 + $0x3b4] sm:$0xf]
    %v1746 = vld [vmem:[#allocation10 + $0x3b8] sm:$0xf]
    %v1747 = vld [vmem:[#allocation10 + $0x3bc] sm:$0xf]
    %v1748 = vld [vmem:[#allocation10 + $0x3c0] sm:$0xf]
    %v1749 = vld [vmem:[#allocation10 + $0x3c4] sm:$0xf]
    %v1750 = vld [vmem:[#allocation10 + $0x3c8] sm:$0xf]
    %v1751 = vld [vmem:[#allocation10 + $0x3cc] sm:$0xf]
    %v1752 = vld [vmem:[#allocation10 + $0x3d0] sm:$0xf]
    %v1753 = vld [vmem:[#allocation10 + $0x3d4] sm:$0xf]
    %v1754 = vld [vmem:[#allocation10 + $0x3d8] sm:$0xf]
    %v1755 = vld [vmem:[#allocation10 + $0x3dc] sm:$0xf]
    %v1756 = vld [vmem:[#allocation10 + $0x3e0] sm:$0xf]
    %v1757 = vld [vmem:[#allocation10 + $0x3e4] sm:$0xf]
    %v1758 = vld [vmem:[#allocation10 + $0x3e8] sm:$0xf]
    %v1759 = vld [vmem:[#allocation10 + $0x3ec] sm:$0xf]
    %v1760 = vld [vmem:[#allocation10 + $0x3f0] sm:$0xf]
    %v1761 = vld [vmem:[#allocation10 + $0x3f4] sm:$0xf]
    %v1762 = vld [vmem:[#allocation10 + $0x3f8] sm:$0xf]
    %v1763 = vld [vmem:[#allocation10 + $0x3fc] sm:$0xf]
    %v1764 = vld [vmem:[%s6] sm:$0x1]
    %v1766 = vperm.slane %v1764, 0
    %v2024 = vunpack.c.l.b16 %v1508
    %v2025 = vunpack.c.l.b16 %v1509
    %v2026 = vunpack.c.l.b16 %v1510
    %v2027 = vunpack.c.l.b16 %v1511
    %v2028 = vunpack.c.l.b16 %v1512
    %v2029 = vunpack.c.l.b16 %v1513
    %v2030 = vunpack.c.l.b16 %v1514
    %v2031 = vunpack.c.l.b16 %v1515
    %v2032 = vunpack.c.l.b16 %v1516
    %v2033 = vunpack.c.l.b16 %v1517
    %v2034 = vunpack.c.l.b16 %v1518
    %v2035 = vunpack.c.l.b16 %v1519
    %v2036 = vunpack.c.l.b16 %v1520
    %v2037 = vunpack.c.l.b16 %v1521
    %v2038 = vunpack.c.l.b16 %v1522
    %v2039 = vunpack.c.l.b16 %v1523
    %v2040 = vunpack.c.l.b16 %v1524
    %v2041 = vunpack.c.l.b16 %v1525
    %v2042 = vunpack.c.l.b16 %v1526
    %v2043 = vunpack.c.l.b16 %v1527
    %v2044 = vunpack.c.l.b16 %v1528
    %v2045 = vunpack.c.l.b16 %v1529
    %v2046 = vunpack.c.l.b16 %v1530
    %v2047 = vunpack.c.l.b16 %v1531
    %v2048 = vunpack.c.l.b16 %v1532
    %v2049 = vunpack.c.l.b16 %v1533
    %v2050 = vunpack.c.l.b16 %v1534
    %v2051 = vunpack.c.l.b16 %v1535
    %v2052 = vunpack.c.l.b16 %v1536
    %v2053 = vunpack.c.l.b16 %v1537
    %v2054 = vunpack.c.l.b16 %v1538
    %v2055 = vunpack.c.l.b16 %v1539
    %v2056 = vunpack.c.l.b16 %v1540
    %v2057 = vunpack.c.l.b16 %v1541
    %v2058 = vunpack.c.l.b16 %v1542
    %v2059 = vunpack.c.l.b16 %v1543
    %v2060 = vunpack.c.l.b16 %v1544
    %v2061 = vunpack.c.l.b16 %v1545
    %v2062 = vunpack.c.l.b16 %v1546
    %v2063 = vunpack.c.l.b16 %v1547
    %v2064 = vunpack.c.l.b16 %v1548
    %v2065 = vunpack.c.l.b16 %v1549
    %v2066 = vunpack.c.l.b16 %v1550
    %v2067 = vunpack.c.l.b16 %v1551
    %v2068 = vunpack.c.l.b16 %v1552
    %v2069 = vunpack.c.l.b16 %v1553
    %v2070 = vunpack.c.l.b16 %v1554
    %v2071 = vunpack.c.l.b16 %v1555
    %v2072 = vunpack.c.l.b16 %v1556
    %v2073 = vunpack.c.l.b16 %v1557
    %v2074 = vunpack.c.l.b16 %v1558
    %v2075 = vunpack.c.l.b16 %v1559
    %v2076 = vunpack.c.l.b16 %v1560
    %v2077 = vunpack.c.l.b16 %v1561
    %v2078 = vunpack.c.l.b16 %v1562
    %v2079 = vunpack.c.l.b16 %v1563
    %v2080 = vunpack.c.l.b16 %v1564
    %v2081 = vunpack.c.l.b16 %v1565
    %v2082 = vunpack.c.l.b16 %v1566
    %v2083 = vunpack.c.l.b16 %v1567
    %v2084 = vunpack.c.l.b16 %v1568
    %v2085 = vunpack.c.l.b16 %v1569
    %v2086 = vunpack.c.l.b16 %v1570
    %v2087 = vunpack.c.l.b16 %v1571
    %v2088 = vunpack.c.l.b16 %v1572
    %v2089 = vunpack.c.l.b16 %v1573
    %v2090 = vunpack.c.l.b16 %v1574
    %v2091 = vunpack.c.l.b16 %v1575
    %v2092 = vunpack.c.l.b16 %v1576
    %v2093 = vunpack.c.l.b16 %v1577
    %v2094 = vunpack.c.l.b16 %v1578
    %v2095 = vunpack.c.l.b16 %v1579
    %v2096 = vunpack.c.l.b16 %v1580
    %v2097 = vunpack.c.l.b16 %v1581
    %v2098 = vunpack.c.l.b16 %v1582
    %v2099 = vunpack.c.l.b16 %v1583
    %v2100 = vunpack.c.l.b16 %v1584
    %v2101 = vunpack.c.l.b16 %v1585
    %v2102 = vunpack.c.l.b16 %v1586
    %v2103 = vunpack.c.l.b16 %v1587
    %v2104 = vunpack.c.l.b16 %v1588
    %v2105 = vunpack.c.l.b16 %v1589
    %v2106 = vunpack.c.l.b16 %v1590
    %v2107 = vunpack.c.l.b16 %v1591
    %v2108 = vunpack.c.l.b16 %v1592
    %v2109 = vunpack.c.l.b16 %v1593
    %v2110 = vunpack.c.l.b16 %v1594
    %v2111 = vunpack.c.l.b16 %v1595
    %v2112 = vunpack.c.l.b16 %v1596
    %v2113 = vunpack.c.l.b16 %v1597
    %v2114 = vunpack.c.l.b16 %v1598
    %v2115 = vunpack.c.l.b16 %v1599
    %v2116 = vunpack.c.l.b16 %v1600
    %v2117 = vunpack.c.l.b16 %v1601
    %v2118 = vunpack.c.l.b16 %v1602
    %v2119 = vunpack.c.l.b16 %v1603
    %v2120 = vunpack.c.l.b16 %v1604
    %v2121 = vunpack.c.l.b16 %v1605
    %v2122 = vunpack.c.l.b16 %v1606
    %v2123 = vunpack.c.l.b16 %v1607
    %v2124 = vunpack.c.l.b16 %v1608
    %v2125 = vunpack.c.l.b16 %v1609
    %v2126 = vunpack.c.l.b16 %v1610
    %v2127 = vunpack.c.l.b16 %v1611
    %v2128 = vunpack.c.l.b16 %v1612
    %v2129 = vunpack.c.l.b16 %v1613
    %v2130 = vunpack.c.l.b16 %v1614
    %v2131 = vunpack.c.l.b16 %v1615
    %v2132 = vunpack.c.l.b16 %v1616
    %v2133 = vunpack.c.l.b16 %v1617
    %v2134 = vunpack.c.l.b16 %v1618
    %v2135 = vunpack.c.l.b16 %v1619
    %v2136 = vunpack.c.l.b16 %v1620
    %v2137 = vunpack.c.l.b16 %v1621
    %v2138 = vunpack.c.l.b16 %v1622
    %v2139 = vunpack.c.l.b16 %v1623
    %v2140 = vunpack.c.l.b16 %v1624
    %v2141 = vunpack.c.l.b16 %v1625
    %v2142 = vunpack.c.l.b16 %v1626
    %v2143 = vunpack.c.l.b16 %v1627
    %v2144 = vunpack.c.l.b16 %v1628
    %v2145 = vunpack.c.l.b16 %v1629
    %v2146 = vunpack.c.l.b16 %v1630
    %v2147 = vunpack.c.l.b16 %v1631
    %v2148 = vunpack.c.l.b16 %v1632
    %v2149 = vunpack.c.l.b16 %v1633
    %v2150 = vunpack.c.l.b16 %v1634
    %v2151 = vunpack.c.l.b16 %v1635
    %v2152 = vunpack.c.l.b16 %v1636
    %v2153 = vunpack.c.l.b16 %v1637
    %v2154 = vunpack.c.l.b16 %v1638
    %v2155 = vunpack.c.l.b16 %v1639
    %v2156 = vunpack.c.l.b16 %v1640
    %v2157 = vunpack.c.l.b16 %v1641
    %v2158 = vunpack.c.l.b16 %v1642
    %v2159 = vunpack.c.l.b16 %v1643
    %v2160 = vunpack.c.l.b16 %v1644
    %v2161 = vunpack.c.l.b16 %v1645
    %v2162 = vunpack.c.l.b16 %v1646
    %v2163 = vunpack.c.l.b16 %v1647
    %v2164 = vunpack.c.l.b16 %v1648
    %v2165 = vunpack.c.l.b16 %v1649
    %v2166 = vunpack.c.l.b16 %v1650
    %v2167 = vunpack.c.l.b16 %v1651
    %v2168 = vunpack.c.l.b16 %v1652
    %v2169 = vunpack.c.l.b16 %v1653
    %v2170 = vunpack.c.l.b16 %v1654
    %v2171 = vunpack.c.l.b16 %v1655
    %v2172 = vunpack.c.l.b16 %v1656
    %v2173 = vunpack.c.l.b16 %v1657
    %v2174 = vunpack.c.l.b16 %v1658
    %v2175 = vunpack.c.l.b16 %v1659
    %v2176 = vunpack.c.l.b16 %v1660
    %v2177 = vunpack.c.l.b16 %v1661
    %v2178 = vunpack.c.l.b16 %v1662
    %v2179 = vunpack.c.l.b16 %v1663
    %v2180 = vunpack.c.l.b16 %v1664
    %v2181 = vunpack.c.l.b16 %v1665
    %v2182 = vunpack.c.l.b16 %v1666
    %v2183 = vunpack.c.l.b16 %v1667
    %v2184 = vunpack.c.l.b16 %v1668
    %v2185 = vunpack.c.l.b16 %v1669
    %v2186 = vunpack.c.l.b16 %v1670
    %v2187 = vunpack.c.l.b16 %v1671
    %v2188 = vunpack.c.l.b16 %v1672
    %v2189 = vunpack.c.l.b16 %v1673
    %v2190 = vunpack.c.l.b16 %v1674
    %v2191 = vunpack.c.l.b16 %v1675
    %v2192 = vunpack.c.l.b16 %v1676
    %v2193 = vunpack.c.l.b16 %v1677
    %v2194 = vunpack.c.l.b16 %v1678
    %v2195 = vunpack.c.l.b16 %v1679
    %v2196 = vunpack.c.l.b16 %v1680
    %v2197 = vunpack.c.l.b16 %v1681
    %v2198 = vunpack.c.l.b16 %v1682
    %v2199 = vunpack.c.l.b16 %v1683
    %v2200 = vunpack.c.l.b16 %v1684
    %v2201 = vunpack.c.l.b16 %v1685
    %v2202 = vunpack.c.l.b16 %v1686
    %v2203 = vunpack.c.l.b16 %v1687
    %v2204 = vunpack.c.l.b16 %v1688
    %v2205 = vunpack.c.l.b16 %v1689
    %v2206 = vunpack.c.l.b16 %v1690
    %v2207 = vunpack.c.l.b16 %v1691
    %v2208 = vunpack.c.l.b16 %v1692
    %v2209 = vunpack.c.l.b16 %v1693
    %v2210 = vunpack.c.l.b16 %v1694
    %v2211 = vunpack.c.l.b16 %v1695
    %v2212 = vunpack.c.l.b16 %v1696
    %v2213 = vunpack.c.l.b16 %v1697
    %v2214 = vunpack.c.l.b16 %v1698
    %v2215 = vunpack.c.l.b16 %v1699
    %v2216 = vunpack.c.l.b16 %v1700
    %v2217 = vunpack.c.l.b16 %v1701
    %v2218 = vunpack.c.l.b16 %v1702
    %v2219 = vunpack.c.l.b16 %v1703
    %v2220 = vunpack.c.l.b16 %v1704
    %v2221 = vunpack.c.l.b16 %v1705
    %v2222 = vunpack.c.l.b16 %v1706
    %v2223 = vunpack.c.l.b16 %v1707
    %v2224 = vunpack.c.l.b16 %v1708
    %v2225 = vunpack.c.l.b16 %v1709
    %v2226 = vunpack.c.l.b16 %v1710
    %v2227 = vunpack.c.l.b16 %v1711
    %v2228 = vunpack.c.l.b16 %v1712
    %v2229 = vunpack.c.l.b16 %v1713
    %v2230 = vunpack.c.l.b16 %v1714
    %v2231 = vunpack.c.l.b16 %v1715
    %v2232 = vunpack.c.l.b16 %v1716
    %v2233 = vunpack.c.l.b16 %v1717
    %v2234 = vunpack.c.l.b16 %v1718
    %v2235 = vunpack.c.l.b16 %v1719
    %v2236 = vunpack.c.l.b16 %v1720
    %v2237 = vunpack.c.l.b16 %v1721
    %v2238 = vunpack.c.l.b16 %v1722
    %v2239 = vunpack.c.l.b16 %v1723
    %v2240 = vunpack.c.l.b16 %v1724
    %v2241 = vunpack.c.l.b16 %v1725
    %v2242 = vunpack.c.l.b16 %v1726
    %v2243 = vunpack.c.l.b16 %v1727
    %v2244 = vunpack.c.l.b16 %v1728
    %v2245 = vunpack.c.l.b16 %v1729
    %v2246 = vunpack.c.l.b16 %v1730
    %v2247 = vunpack.c.l.b16 %v1731
    %v2248 = vunpack.c.l.b16 %v1732
    %v2249 = vunpack.c.l.b16 %v1733
    %v2250 = vunpack.c.l.b16 %v1734
    %v2251 = vunpack.c.l.b16 %v1735
    %v2252 = vunpack.c.l.b16 %v1736
    %v2253 = vunpack.c.l.b16 %v1737
    %v2254 = vunpack.c.l.b16 %v1738
    %v2255 = vunpack.c.l.b16 %v1739
    %v2256 = vunpack.c.l.b16 %v1740
    %v2257 = vunpack.c.l.b16 %v1741
    %v2258 = vunpack.c.l.b16 %v1742
    %v2259 = vunpack.c.l.b16 %v1743
    %v2260 = vunpack.c.l.b16 %v1744
    %v2261 = vunpack.c.l.b16 %v1745
    %v2262 = vunpack.c.l.b16 %v1746
    %v2263 = vunpack.c.l.b16 %v1747
    %v2264 = vunpack.c.l.b16 %v1748
    %v2265 = vunpack.c.l.b16 %v1749
    %v2266 = vunpack.c.l.b16 %v1750
    %v2267 = vunpack.c.l.b16 %v1751
    %v2268 = vunpack.c.l.b16 %v1752
    %v2269 = vunpack.c.l.b16 %v1753
    %v2270 = vunpack.c.l.b16 %v1754
    %v2271 = vunpack.c.l.b16 %v1755
    %v2272 = vunpack.c.l.b16 %v1756
    %v2273 = vunpack.c.l.b16 %v1757
    %v2274 = vunpack.c.l.b16 %v1758
    %v2275 = vunpack.c.l.b16 %v1759
    %v2276 = vunpack.c.l.b16 %v1760
    %v2277 = vunpack.c.l.b16 %v1761
    %v2278 = vunpack.c.l.b16 %v1762
    %v2279 = vunpack.c.l.b16 %v1763
    %v2280 = vpack.c.b16 %v2025, %v2024
    %v2281 = vpack.c.b16 %v2027, %v2026
    %v2282 = vpack.c.b16 %v2029, %v2028
    %v2283 = vpack.c.b16 %v2031, %v2030
    %v2284 = vpack.c.b16 %v2033, %v2032
    %v2285 = vpack.c.b16 %v2035, %v2034
    %v2286 = vpack.c.b16 %v2037, %v2036
    %v2287 = vpack.c.b16 %v2039, %v2038
    %v2288 = vpack.c.b16 %v2041, %v2040
    %v2289 = vpack.c.b16 %v2043, %v2042
    %v2290 = vpack.c.b16 %v2045, %v2044
    %v2291 = vpack.c.b16 %v2047, %v2046
    %v2292 = vpack.c.b16 %v2049, %v2048
    %v2293 = vpack.c.b16 %v2051, %v2050
    %v2294 = vpack.c.b16 %v2053, %v2052
    %v2295 = vpack.c.b16 %v2055, %v2054
    %v2296 = vpack.c.b16 %v2057, %v2056
    %v2297 = vpack.c.b16 %v2059, %v2058
    %v2298 = vpack.c.b16 %v2061, %v2060
    %v2299 = vpack.c.b16 %v2063, %v2062
    %v2300 = vpack.c.b16 %v2065, %v2064
    %v2301 = vpack.c.b16 %v2067, %v2066
    %v2302 = vpack.c.b16 %v2069, %v2068
    %v2303 = vpack.c.b16 %v2071, %v2070
    %v2304 = vpack.c.b16 %v2073, %v2072
    %v2305 = vpack.c.b16 %v2075, %v2074
    %v2306 = vpack.c.b16 %v2077, %v2076
    %v2307 = vpack.c.b16 %v2079, %v2078
    %v2308 = vpack.c.b16 %v2081, %v2080
    %v2309 = vpack.c.b16 %v2083, %v2082
    %v2310 = vpack.c.b16 %v2085, %v2084
    %v2311 = vpack.c.b16 %v2087, %v2086
    %v2312 = vpack.c.b16 %v2089, %v2088
    %v2313 = vpack.c.b16 %v2091, %v2090
    %v2314 = vpack.c.b16 %v2093, %v2092
    %v2315 = vpack.c.b16 %v2095, %v2094
    %v2316 = vpack.c.b16 %v2097, %v2096
    %v2317 = vpack.c.b16 %v2099, %v2098
    %v2318 = vpack.c.b16 %v2101, %v2100
    %v2319 = vpack.c.b16 %v2103, %v2102
    %v2320 = vpack.c.b16 %v2105, %v2104
    %v2321 = vpack.c.b16 %v2107, %v2106
    %v2322 = vpack.c.b16 %v2109, %v2108
    %v2323 = vpack.c.b16 %v2111, %v2110
    %v2324 = vpack.c.b16 %v2113, %v2112
    %v2325 = vpack.c.b16 %v2115, %v2114
    %v2326 = vpack.c.b16 %v2117, %v2116
    %v2327 = vpack.c.b16 %v2119, %v2118
    %v2328 = vpack.c.b16 %v2121, %v2120
    %v2329 = vpack.c.b16 %v2123, %v2122
    %v2330 = vpack.c.b16 %v2125, %v2124
    %v2331 = vpack.c.b16 %v2127, %v2126
    %v2332 = vpack.c.b16 %v2129, %v2128
    %v2333 = vpack.c.b16 %v2131, %v2130
    %v2334 = vpack.c.b16 %v2133, %v2132
    %v2335 = vpack.c.b16 %v2135, %v2134
    %v2336 = vpack.c.b16 %v2137, %v2136
    %v2337 = vpack.c.b16 %v2139, %v2138
    %v2338 = vpack.c.b16 %v2141, %v2140
    %v2339 = vpack.c.b16 %v2143, %v2142
    %v2340 = vpack.c.b16 %v2145, %v2144
    %v2341 = vpack.c.b16 %v2147, %v2146
    %v2342 = vpack.c.b16 %v2149, %v2148
    %v2343 = vpack.c.b16 %v2151, %v2150
    %v2344 = vpack.c.b16 %v2153, %v2152
    %v2345 = vpack.c.b16 %v2155, %v2154
    %v2346 = vpack.c.b16 %v2157, %v2156
    %v2347 = vpack.c.b16 %v2159, %v2158
    %v2348 = vpack.c.b16 %v2161, %v2160
    %v2349 = vpack.c.b16 %v2163, %v2162
    %v2350 = vpack.c.b16 %v2165, %v2164
    %v2351 = vpack.c.b16 %v2167, %v2166
    %v2352 = vpack.c.b16 %v2169, %v2168
    %v2353 = vpack.c.b16 %v2171, %v2170
    %v2354 = vpack.c.b16 %v2173, %v2172
    %v2355 = vpack.c.b16 %v2175, %v2174
    %v2356 = vpack.c.b16 %v2177, %v2176
    %v2357 = vpack.c.b16 %v2179, %v2178
    %v2358 = vpack.c.b16 %v2181, %v2180
    %v2359 = vpack.c.b16 %v2183, %v2182
    %v2360 = vpack.c.b16 %v2185, %v2184
    %v2361 = vpack.c.b16 %v2187, %v2186
    %v2362 = vpack.c.b16 %v2189, %v2188
    %v2363 = vpack.c.b16 %v2191, %v2190
    %v2364 = vpack.c.b16 %v2193, %v2192
    %v2365 = vpack.c.b16 %v2195, %v2194
    %v2366 = vpack.c.b16 %v2197, %v2196
    %v2367 = vpack.c.b16 %v2199, %v2198
    %v2368 = vpack.c.b16 %v2201, %v2200
    %v2369 = vpack.c.b16 %v2203, %v2202
    %v2370 = vpack.c.b16 %v2205, %v2204
    %v2371 = vpack.c.b16 %v2207, %v2206
    %v2372 = vpack.c.b16 %v2209, %v2208
    %v2373 = vpack.c.b16 %v2211, %v2210
    %v2374 = vpack.c.b16 %v2213, %v2212
    %v2375 = vpack.c.b16 %v2215, %v2214
    %v2376 = vpack.c.b16 %v2217, %v2216
    %v2377 = vpack.c.b16 %v2219, %v2218
    %v2378 = vpack.c.b16 %v2221, %v2220
    %v2379 = vpack.c.b16 %v2223, %v2222
    %v2380 = vpack.c.b16 %v2225, %v2224
    %v2381 = vpack.c.b16 %v2227, %v2226
    %v2382 = vpack.c.b16 %v2229, %v2228
    %v2383 = vpack.c.b16 %v2231, %v2230
    %v2384 = vpack.c.b16 %v2233, %v2232
    %v2385 = vpack.c.b16 %v2235, %v2234
    %v2386 = vpack.c.b16 %v2237, %v2236
    %v2387 = vpack.c.b16 %v2239, %v2238
    %v2388 = vpack.c.b16 %v2241, %v2240
    %v2389 = vpack.c.b16 %v2243, %v2242
    %v2390 = vpack.c.b16 %v2245, %v2244
    %v2391 = vpack.c.b16 %v2247, %v2246
    %v2392 = vpack.c.b16 %v2249, %v2248
    %v2393 = vpack.c.b16 %v2251, %v2250
    %v2394 = vpack.c.b16 %v2253, %v2252
    %v2395 = vpack.c.b16 %v2255, %v2254
    %v2396 = vpack.c.b16 %v2257, %v2256
    %v2397 = vpack.c.b16 %v2259, %v2258
    %v2398 = vpack.c.b16 %v2261, %v2260
    %v2399 = vpack.c.b16 %v2263, %v2262
    %v2400 = vpack.c.b16 %v2265, %v2264
    %v2401 = vpack.c.b16 %v2267, %v2266
    %v2402 = vpack.c.b16 %v2269, %v2268
    %v2403 = vpack.c.b16 %v2271, %v2270
    %v2404 = vpack.c.b16 %v2273, %v2272
    %v2405 = vpack.c.b16 %v2275, %v2274
    %v2406 = vpack.c.b16 %v2277, %v2276
    %v2407 = vpack.c.b16 %v2279, %v2278
    %2536 = vmatpush.bf16.msra.mxu0 %v2287
    %2537 = vmatpush.bf16.msra.mxu0 %v2286
    %2538 = vmatpush.bf16.msra.mxu0 %v2285
    %2539 = vmatpush.bf16.msra.mxu0 %v2284
    %2540 = vmatpush.bf16.msra.mxu0 %v2283
    %2541 = vmatpush.bf16.msra.mxu0 %v2282
    %2542 = vmatpush.bf16.msra.mxu0 %v2281
    %2543 = vmatpush.bf16.msra.mxu0 %v2280
    %2544 = vmatmul.bf16.gmra.mxu0 %v1492
    %v2545 = vpop.f32.mrf.mxu0
    %v2546 = vadd.f32 %v1766, %v2545
    %v2547 = vpop.f32.mrf.mxu0
    %2548 = vdwg.mxu0
    %2549 = vmatpush.bf16.msra.mxu0 %v2295
    %2550 = vmatpush.bf16.msra.mxu0 %v2294
    %2551 = vmatpush.bf16.msra.mxu0 %v2293
    %2552 = vmatpush.bf16.msra.mxu0 %v2292
    %2553 = vmatpush.bf16.msra.mxu0 %v2291
    %2554 = vmatpush.bf16.msra.mxu0 %v2290
    %2555 = vmatpush.bf16.msra.mxu0 %v2289
    %2556 = vmatpush.bf16.msra.mxu0 %v2288
    %2557 = vmatmul.bf16.gmra.mxu0 %v1493
    %v2558 = vpop.f32.mrf.mxu0
    %v2559 = vadd.f32 %v2546, %v2558
    %v2560 = vpop.f32.mrf.mxu0
    %2561 = vdwg.mxu0
    %2562 = vmatpush.bf16.msra.mxu0 %v2303
    %2563 = vmatpush.bf16.msra.mxu0 %v2302
    %2564 = vmatpush.bf16.msra.mxu0 %v2301
    %2565 = vmatpush.bf16.msra.mxu0 %v2300
    %2566 = vmatpush.bf16.msra.mxu0 %v2299
    %2567 = vmatpush.bf16.msra.mxu0 %v2298
    %2568 = vmatpush.bf16.msra.mxu0 %v2297
    %2569 = vmatpush.bf16.msra.mxu0 %v2296
    %2570 = vmatmul.bf16.gmra.mxu0 %v1494
    %v2571 = vpop.f32.mrf.mxu0
    %v2572 = vadd.f32 %v2559, %v2571
    %v2573 = vpop.f32.mrf.mxu0
    %2574 = vdwg.mxu0
    %2575 = vmatpush.bf16.msra.mxu0 %v2311
    %2576 = vmatpush.bf16.msra.mxu0 %v2310
    %2577 = vmatpush.bf16.msra.mxu0 %v2309
    %2578 = vmatpush.bf16.msra.mxu0 %v2308
    %2579 = vmatpush.bf16.msra.mxu0 %v2307
    %2580 = vmatpush.bf16.msra.mxu0 %v2306
    %2581 = vmatpush.bf16.msra.mxu0 %v2305
    %2582 = vmatpush.bf16.msra.mxu0 %v2304
    %2583 = vmatmul.bf16.gmra.mxu0 %v1495
    %v2584 = vpop.f32.mrf.mxu0
    %v2585 = vadd.f32 %v2572, %v2584
    %v2586 = vpop.f32.mrf.mxu0
    %2587 = vdwg.mxu0
    %2588 = vmatpush.bf16.msra.mxu0 %v2319
    %2589 = vmatpush.bf16.msra.mxu0 %v2318
    %2590 = vmatpush.bf16.msra.mxu0 %v2317
    %2591 = vmatpush.bf16.msra.mxu0 %v2316
    %2592 = vmatpush.bf16.msra.mxu0 %v2315
    %2593 = vmatpush.bf16.msra.mxu0 %v2314
    %2594 = vmatpush.bf16.msra.mxu0 %v2313
    %2595 = vmatpush.bf16.msra.mxu0 %v2312
    %2596 = vmatmul.bf16.gmra.mxu0 %v1496
    %v2597 = vpop.f32.mrf.mxu0
    %v2598 = vadd.f32 %v2585, %v2597
    %v2599 = vpop.f32.mrf.mxu0
    %2600 = vdwg.mxu0
    %2601 = vmatpush.bf16.msra.mxu0 %v2327
    %2602 = vmatpush.bf16.msra.mxu0 %v2326
    %2603 = vmatpush.bf16.msra.mxu0 %v2325
    %2604 = vmatpush.bf16.msra.mxu0 %v2324
    %2605 = vmatpush.bf16.msra.mxu0 %v2323
    %2606 = vmatpush.bf16.msra.mxu0 %v2322
    %2607 = vmatpush.bf16.msra.mxu0 %v2321
    %2608 = vmatpush.bf16.msra.mxu0 %v2320
    %2609 = vmatmul.bf16.gmra.mxu0 %v1497
    %v2610 = vpop.f32.mrf.mxu0
    %v2611 = vadd.f32 %v2598, %v2610
    %v2612 = vpop.f32.mrf.mxu0
    %2613 = vdwg.mxu0
    %2614 = vmatpush.bf16.msra.mxu0 %v2335
    %2615 = vmatpush.bf16.msra.mxu0 %v2334
    %2616 = vmatpush.bf16.msra.mxu0 %v2333
    %2617 = vmatpush.bf16.msra.mxu0 %v2332
    %2618 = vmatpush.bf16.msra.mxu0 %v2331
    %2619 = vmatpush.bf16.msra.mxu0 %v2330
    %2620 = vmatpush.bf16.msra.mxu0 %v2329
    %2621 = vmatpush.bf16.msra.mxu0 %v2328
    %2622 = vmatmul.bf16.gmra.mxu0 %v1498
    %v2623 = vpop.f32.mrf.mxu0
    %v2624 = vadd.f32 %v2611, %v2623
    %v2625 = vpop.f32.mrf.mxu0
    %2626 = vdwg.mxu0
    %2627 = vmatpush.bf16.msra.mxu0 %v2343
    %2628 = vmatpush.bf16.msra.mxu0 %v2342
    %2629 = vmatpush.bf16.msra.mxu0 %v2341
    %2630 = vmatpush.bf16.msra.mxu0 %v2340
    %2631 = vmatpush.bf16.msra.mxu0 %v2339
    %2632 = vmatpush.bf16.msra.mxu0 %v2338
    %2633 = vmatpush.bf16.msra.mxu0 %v2337
    %2634 = vmatpush.bf16.msra.mxu0 %v2336
    %2635 = vmatmul.bf16.gmra.mxu0 %v1499
    %v2636 = vpop.f32.mrf.mxu0
    %v2637 = vadd.f32 %v2624, %v2636
    %v2638 = vpop.f32.mrf.mxu0
    %2639 = vdwg.mxu0
    %2640 = vmatpush.bf16.msra.mxu0 %v2351
    %2641 = vmatpush.bf16.msra.mxu0 %v2350
    %2642 = vmatpush.bf16.msra.mxu0 %v2349
    %2643 = vmatpush.bf16.msra.mxu0 %v2348
    %2644 = vmatpush.bf16.msra.mxu0 %v2347
    %2645 = vmatpush.bf16.msra.mxu0 %v2346
    %2646 = vmatpush.bf16.msra.mxu0 %v2345
    %2647 = vmatpush.bf16.msra.mxu0 %v2344
    %2648 = vmatmul.bf16.gmra.mxu0 %v1500
    %v2649 = vpop.f32.mrf.mxu0
    %v2650 = vadd.f32 %v2637, %v2649
    %v2651 = vpop.f32.mrf.mxu0
    %2652 = vdwg.mxu0
    %2653 = vmatpush.bf16.msra.mxu0 %v2359
    %2654 = vmatpush.bf16.msra.mxu0 %v2358
    %2655 = vmatpush.bf16.msra.mxu0 %v2357
    %2656 = vmatpush.bf16.msra.mxu0 %v2356
    %2657 = vmatpush.bf16.msra.mxu0 %v2355
    %2658 = vmatpush.bf16.msra.mxu0 %v2354
    %2659 = vmatpush.bf16.msra.mxu0 %v2353
    %2660 = vmatpush.bf16.msra.mxu0 %v2352
    %2661 = vmatmul.bf16.gmra.mxu0 %v1501
    %v2662 = vpop.f32.mrf.mxu0
    %v2663 = vadd.f32 %v2650, %v2662
    %v2664 = vpop.f32.mrf.mxu0
    %2665 = vdwg.mxu0
    %2666 = vmatpush.bf16.msra.mxu0 %v2367
    %2667 = vmatpush.bf16.msra.mxu0 %v2366
    %2668 = vmatpush.bf16.msra.mxu0 %v2365
    %2669 = vmatpush.bf16.msra.mxu0 %v2364
    %2670 = vmatpush.bf16.msra.mxu0 %v2363
    %2671 = vmatpush.bf16.msra.mxu0 %v2362
    %2672 = vmatpush.bf16.msra.mxu0 %v2361
    %2673 = vmatpush.bf16.msra.mxu0 %v2360
    %2674 = vmatmul.bf16.gmra.mxu0 %v1502
    %v2675 = vpop.f32.mrf.mxu0
    %v2676 = vadd.f32 %v2663, %v2675
    %v2677 = vpop.f32.mrf.mxu0
    %2678 = vdwg.mxu0
    %2679 = vmatpush.bf16.msra.mxu0 %v2375
    %2680 = vmatpush.bf16.msra.mxu0 %v2374
    %2681 = vmatpush.bf16.msra.mxu0 %v2373
    %2682 = vmatpush.bf16.msra.mxu0 %v2372
    %2683 = vmatpush.bf16.msra.mxu0 %v2371
    %2684 = vmatpush.bf16.msra.mxu0 %v2370
    %2685 = vmatpush.bf16.msra.mxu0 %v2369
    %2686 = vmatpush.bf16.msra.mxu0 %v2368
    %2687 = vmatmul.bf16.gmra.mxu0 %v1503
    %v2688 = vpop.f32.mrf.mxu0
    %v2689 = vadd.f32 %v2676, %v2688
    %v2690 = vpop.f32.mrf.mxu0
    %2691 = vdwg.mxu0
    %2692 = vmatpush.bf16.msra.mxu0 %v2383
    %2693 = vmatpush.bf16.msra.mxu0 %v2382
    %2694 = vmatpush.bf16.msra.mxu0 %v2381
    %2695 = vmatpush.bf16.msra.mxu0 %v2380
    %2696 = vmatpush.bf16.msra.mxu0 %v2379
    %2697 = vmatpush.bf16.msra.mxu0 %v2378
    %2698 = vmatpush.bf16.msra.mxu0 %v2377
    %2699 = vmatpush.bf16.msra.mxu0 %v2376
    %2700 = vmatmul.bf16.gmra.mxu0 %v1504
    %v2701 = vpop.f32.mrf.mxu0
    %v2702 = vadd.f32 %v2689, %v2701
    %v2703 = vpop.f32.mrf.mxu0
    %2704 = vdwg.mxu0
    %2705 = vmatpush.bf16.msra.mxu0 %v2391
    %2706 = vmatpush.bf16.msra.mxu0 %v2390
    %2707 = vmatpush.bf16.msra.mxu0 %v2389
    %2708 = vmatpush.bf16.msra.mxu0 %v2388
    %2709 = vmatpush.bf16.msra.mxu0 %v2387
    %2710 = vmatpush.bf16.msra.mxu0 %v2386
    %2711 = vmatpush.bf16.msra.mxu0 %v2385
    %2712 = vmatpush.bf16.msra.mxu0 %v2384
    %2713 = vmatmul.bf16.gmra.mxu0 %v1505
    %v2714 = vpop.f32.mrf.mxu0
    %v2715 = vadd.f32 %v2702, %v2714
    %v2716 = vpop.f32.mrf.mxu0
    %2717 = vdwg.mxu0
    %2718 = vmatpush.bf16.msra.mxu0 %v2399
    %2719 = vmatpush.bf16.msra.mxu0 %v2398
    %2720 = vmatpush.bf16.msra.mxu0 %v2397
    %2721 = vmatpush.bf16.msra.mxu0 %v2396
    %2722 = vmatpush.bf16.msra.mxu0 %v2395
    %2723 = vmatpush.bf16.msra.mxu0 %v2394
    %2724 = vmatpush.bf16.msra.mxu0 %v2393
    %2725 = vmatpush.bf16.msra.mxu0 %v2392
    %2726 = vmatmul.bf16.gmra.mxu0 %v1506
    %v2727 = vpop.f32.mrf.mxu0
    %v2728 = vadd.f32 %v2715, %v2727
    %v2729 = vpop.f32.mrf.mxu0
    %2730 = vdwg.mxu0
    %2731 = vmatpush.bf16.msra.mxu0 %v2407
    %2732 = vmatpush.bf16.msra.mxu0 %v2406
    %2733 = vmatpush.bf16.msra.mxu0 %v2405
    %2734 = vmatpush.bf16.msra.mxu0 %v2404
    %2735 = vmatpush.bf16.msra.mxu0 %v2403
    %2736 = vmatpush.bf16.msra.mxu0 %v2402
    %2737 = vmatpush.bf16.msra.mxu0 %v2401
    %2738 = vmatpush.bf16.msra.mxu0 %v2400
    %2739 = vmatmul.bf16.gmra.mxu0 %v1507
    %v2740 = vpop.f32.mrf.mxu0
    %v2741 = vadd.f32 %v2728, %v2740
    %v2742 = vpop.f32.mrf.mxu0
    %2743 = vdwg.mxu0
    %2744 = vst [vmem:[#allocation11] sm:$0xff] %v2741
    // Predicated region
    $region50: #{tpu_custom_call.1} parent=1 // pred_check
      _
    $region51: #{tpu_custom_call.1} parent=1 // pred_check_branch
      %2746 = sbr.rel (0) target = $region53
    $region52: #{tpu_custom_call.1} parent=1 // pred_region
      %2748 = vsyncadd [#allocation4], 0
      %s2750 = sshll.u32 [#allocation11], 4
      %s2751 = int_to_ptr.vmem [resolvable:$true] %s2750
      %s2752 = sshll.u32 %s7, 4
      %s2753 = int_to_ptr.hbm [resolvable:$true] %s2752
      %2755 = dma.vmem_to_hbm [thread:$0]  %s2751, 128, %s2753, [#allocation4]
    $region53: #{tpu_custom_call.1} parent=1 // pred_fallthru
      _
    // Predicated region
    $region54: #{tpu_custom_call.1} parent=1 // pred_check
      _
    $region55: #{tpu_custom_call.1} parent=1 // pred_check_branch
      %2757 = sbr.rel (0) target = $region57
    $region56: #{tpu_custom_call.1} parent=1 // pred_region
      %2759 = dma.done [#allocation4], 128
    $region57: #{tpu_custom_call.1} parent=1 // pred_fallthru
      _
    %2760 = vsyncpa [#allocation3], 1
    %2761 = vsyncpa [#allocation6], 1
    %2762 = vsyncpa [#allocation9], 1
    %2763 = vsyncpa [#allocation4], 1

</llo_original>
